<compile_context>
chip_gen: v7x
topology: tpu7x:2x2x1
jax: 0.10.0
libtpu: 0.0.40
codegen_flags: <defaults>
</compile_context>

<pallas_src>
import functools

import jax
import jax.numpy as jnp
from jax import lax
from jax.experimental import pallas as pl
from jax.experimental.pallas import tpu as pltpu

_NEG = -1e30  # finite "minus infinity" for padded vocab columns / max init


def _round_up(x, m):
    return (x + m - 1) // m * m


def skipgram_kernel(ids_ref, emb_hbm, w_ref, b_ref, out_ref,
                    emb_f32, emb_bf, m_sc, l_sc, sem):
    """One (batch-tile i, vocab-tile j) grid step.

    ids_ref : (B_pad,)     int32, SMEM (scalar prefetch)
    emb_hbm : (V, D)       f32, HBM-resident embedding table (pl.ANY)
    w_ref   : (TN, D)      bf16 VMEM tile of the linear weight (natural layout)
    b_ref   : (1, V_pad)   f32 VMEM, whole bias resident (DMA'd once)
    out_ref : (TB, V_pad)  f32 VMEM, resident across the vocab axis ((B,V) layout)
    emb_f32 : (TB, D)      f32 scratch, gathered embedding rows
    emb_bf  : (TB, D)      bf16 scratch, cast once per batch tile (MXU input)
    m_sc    : (TB, 1)      f32 scratch, running max
    l_sc    : (TB, 1)      f32 scratch, running sum-exp
    sem     : (1,)         DMA semaphore shared by the equal-sized row copies
    """
    i = pl.program_id(0)           # batch-tile index
    j = pl.program_id(1)           # vocab-tile index
    nj = pl.num_programs(1)
    tb = emb_f32.shape[0]
    tn = w_ref.shape[0]

    @pl.when(j == 0)
    def _gather_and_init():
        # Gather this batch tile's embedding rows straight from HBM: only
        # TB*D*4 bytes move.  All descriptors are issued back-to-back so the
        # row DMAs overlap, then waited on via the *same* descriptors.
        copies = []
        for r in range(tb):
            tok = ids_ref[i * tb + r]
            cp = pltpu.make_async_copy(
                emb_hbm.at[pl.ds(tok, 1)], emb_f32.at[pl.ds(r, 1)], sem.at[0])
            cp.start()
            copies.append(cp)
        for cp in copies:
            cp.wait()
        # One cheap cast per batch tile; the MXU consumes bf16, accumulates f32.
        emb_bf[...] = emb_f32[...].astype(emb_bf.dtype)
        m_sc[...] = jnp.full_like(m_sc, _NEG)
        l_sc[...] = jnp.zeros_like(l_sc)

    col = pl.multiple_of(j * tn, 128)

    # (TB, D) x (TN, D) "nt" contraction on the MXU, f32 accumulation; add the
    # bias slice from the resident bias block.
    logits = lax.dot_general(
        emb_bf[...], w_ref[...],
        dimension_numbers=(((1,), (1,)), ((), ())),
        preferred_element_type=jnp.float32,
    ) + b_ref[:, pl.ds(col, tn)]

    # Online logsumexp across vocab tiles (all f32 VPU/EUP math).
    m_prev = m_sc[...]
    m_new = jnp.maximum(m_prev, jnp.max(logits, axis=1, keepdims=True))
    l_sc[...] = l_sc[...] * jnp.exp(m_prev - m_new) + jnp.sum(
        jnp.exp(logits - m_new), axis=1, keepdims=True)
    m_sc[...] = m_new

    # Lane-dense store straight into the (B, V)-layout resident output block.
    out_ref[:, pl.ds(col, tn)] = logits

    @pl.when(j == nj - 1)
    def _finalize():
        lse = m_sc[...] + jnp.log(l_sc[...])       # (TB, 1)
        out_ref[...] = out_ref[...] - lse          # logits -> log-probs


@functools.partial(jax.jit, static_argnames=("tb", "tn"))
def skipgram_forward(token_ids, emb_table, weight, bias, *, tb=128, tn=512):
    """log_softmax(Embedding(token_ids) @ weight.T + bias, axis=1).

    token_ids : (B,)   int32   (PyTorch uses int64; ids < 2**31 are fine)
    emb_table : (V, D) float32 (nn.Embedding.weight)
    weight    : (V, D) float32 (nn.Linear.weight)
    bias      : (V,)   float32 (nn.Linear.bias)
    """
    B = token_ids.shape[0]
    V, D = emb_table.shape
    assert weight.shape == (V, D)
    assert bias.shape == (V,)
    assert tb % 8 == 0 and tn % 128 == 0

    v_pad = _round_up(V, tn)                 # lane-dense vocab tiles
    tb_eff = min(tb, _round_up(B, 8))        # don't over-tile tiny batches
    # Keep the double-buffered resident (tb, V_pad) f32 output block under
    # ~40 MiB so the kernel also fits v7x's 64 MiB physical VMEM.
    while tb_eff > 8 and 2 * tb_eff * v_pad * 4 > (40 << 20):
        tb_eff //= 2
    b_pad = _round_up(B, tb_eff)
    nb, nv = b_pad // tb_eff, v_pad // tn

    ids_p = jnp.pad(token_ids.astype(jnp.int32), (0, b_pad - B))
    # Embedding table stays untouched (f32, unpadded, HBM-resident).  Weight
    # keeps its natural (V, D) layout, padded along V only and cast to bf16 to
    # halve the dominant HBM stream.  Padded vocab rows are zero and get a huge
    # negative bias so they vanish from the logsumexp.
    emb_tbl = emb_table.astype(jnp.float32)
    w_p = jnp.pad(weight.astype(jnp.bfloat16), ((0, v_pad - V), (0, 0)))
    bias_p = jnp.pad(bias.astype(jnp.float32).reshape(1, V),
                     ((0, 0), (0, v_pad - V)), constant_values=_NEG)

    grid_spec = pltpu.PrefetchScalarGridSpec(
        num_scalar_prefetch=1,
        grid=(nb, nv),
        in_specs=[
            pl.BlockSpec(memory_space=pl.ANY),                   # emb table (HBM)
            pl.BlockSpec((tn, D), lambda i, j, ids: (j, 0)),     # weight tile
            pl.BlockSpec((1, v_pad), lambda i, j, ids: (0, 0)),  # bias, resident
        ],
        # Output block resident across the vocab axis, already in (B, V) layout.
        out_specs=pl.BlockSpec((tb_eff, v_pad), lambda i, j, ids: (i, 0)),
        scratch_shapes=[
            pltpu.VMEM((tb_eff, D), jnp.float32),   # gathered embedding rows
            pltpu.VMEM((tb_eff, D), jnp.bfloat16),  # bf16 MXU input
            pltpu.VMEM((tb_eff, 1), jnp.float32),   # running max
            pltpu.VMEM((tb_eff, 1), jnp.float32),   # running sum-exp
            pltpu.SemaphoreType.DMA((1,)),          # shared gather semaphore
        ],
    )

    # Explicit VMEM budget (double-buffered output + weight tiles + resident
    # bias + scratch), with headroom, capped v7x-safe.
    vmem_need = (2 * tb_eff * v_pad * 4
                 + 2 * tn * D * 2
                 + 2 * v_pad * 4
                 + tb_eff * D * (4 + 2)
                 + 4 * tb_eff * 4)
    vmem_limit = int(min(56 << 20, max(32 << 20, vmem_need + (8 << 20))))

    out = pl.pallas_call(
        skipgram_kernel,
        grid_spec=grid_spec,
        out_shape=jax.ShapeDtypeStruct((b_pad, v_pad), jnp.float32),
        compiler_params=pltpu.CompilerParams(
            dimension_semantics=("parallel", "arbitrary"),
            vmem_limit_bytes=vmem_limit,
        ),
    )(ids_p, emb_tbl, w_p, bias_p)

    return out[:B, :V]


def reference_forward(token_ids, emb_table, weight, bias):
    """Pure-JAX reference matching the kernel's bf16 MXU inputs / f32 math."""
    e = jnp.take(emb_table, token_ids, axis=0)
    logits = jnp.dot(e.astype(jnp.bfloat16).astype(jnp.float32),
                     weight.astype(jnp.bfloat16).astype(jnp.float32).T,
                     precision=lax.Precision.HIGHEST) + bias[None, :]
    return jax.nn.log_softmax(logits, axis=1)


if __name__ == "__main__":
    # Small deterministic setup consistent with the module (embedding_dim=64).
    vocab_size = 1000          # pads to 1024 -> exercises the vocab-tile grid
    embedding_dim = 64
    batch = 6                  # pads to 8 -> exercises batch padding

    key = jax.random.PRNGKey(0)
    k_emb, k_w, k_b, k_idx = jax.random.split(key, 4)

    # nn.Embedding default ~ N(0,1); nn.Linear default ~ U(-1/sqrt(D), 1/sqrt(D)).
    emb_table = jax.random.normal(k_emb, (vocab_size, embedding_dim), jnp.float32)
    bound = 1.0 / (embedding_dim ** 0.5)
    weight = jax.random.uniform(k_w, (vocab_size, embedding_dim),
                                minval=-bound, maxval=bound, dtype=jnp.float32)
    bias = jax.random.uniform(k_b, (vocab_size,),
                              minval=-bound, maxval=bound, dtype=jnp.float32)
    token_ids = jax.random.randint(k_idx, (batch,), 0, vocab_size, dtype=jnp.int32)

    out = skipgram_forward(token_ids, emb_table, weight, bias)
    out = jax.block_until_ready(out)

    ref = reference_forward(token_ids, emb_table, weight, bias)
    if not jnp.allclose(out, ref, atol=1e-3, rtol=1e-3):
        err = float(jnp.max(jnp.abs(out - ref)))
        raise AssertionError(f"Pallas kernel mismatch, max abs err = {err}")

    print("KERNEL_OK")
</pallas_src>

<mosaic_0001>
module attributes {stable_mosaic.version = 11 : i64} {
  func.func @skipgram_kernel(%arg0: i32, %arg1: i32, %arg2: memref<8xi32, #tpu.memory_space<smem>>, %arg3: memref<1000x64xf32, #tpu.memory_space<any>>, %arg4: memref<512x64xbf16, #tpu.memory_space<vmem>>, %arg5: memref<1x1024xf32, #tpu.memory_space<vmem>>, %arg6: memref<8x1024xf32, #tpu.memory_space<vmem>>, %arg7: memref<8x64xf32, #tpu.memory_space<vmem>>, %arg8: memref<8x64xbf16, #tpu.memory_space<vmem>>, %arg9: memref<8x1xf32, #tpu.memory_space<vmem>>, %arg10: memref<8x1xf32, #tpu.memory_space<vmem>>, %arg11: memref<1x!tpu.dma_semaphore, #tpu.memory_space<semaphore_mem>>) attributes {dimension_semantics = [#tpu.dimension_semantics<parallel>, #tpu.dimension_semantics<arbitrary>], iteration_bounds = array<i64: 1, 2>, scalar_prefetch = 1 : i64, scratch_operands = 5 : i64, tpu.core_type = #tpu.core_type<tc>, window_params = [{}, {transform_indices = @transform_1, window_bounds = array<i64: 512, 64>}, {pipeline_mode = #tpu.pipeline_mode<synchronous>, transform_indices = @transform_2, window_bounds = array<i64: 1, 1024>}, {transform_indices = @transform_3, window_bounds = array<i64: 8, 1024>}]} {
    %c0_i32 = arith.constant 0 : i32
    %0 = arith.cmpi eq, %arg1, %c0_i32 : i32
    %1 = arith.extui %0 : i1 to i32
    %c0_i32_0 = arith.constant 0 : i32
    %2 = arith.cmpi ne, %1, %c0_i32_0 : i32
    scf.if %2 {
      %c8_i32 = arith.constant 8 : i32
      %33 = arith.muli %arg0, %c8_i32 : i32
      %c0_i32_17 = arith.constant 0 : i32
      %34 = arith.addi %33, %c0_i32_17 : i32
      %35 = arith.index_cast %34 : i32 to index
      %36 = memref.load %arg2[%35] : memref<8xi32, #tpu.memory_space<smem>>
      %c0_i32_18 = arith.constant 0 : i32
      %c0_i32_19 = arith.constant 0 : i32
      %37 = tpu.memref_slice %arg3[%36, %c0_i32_19] : memref<1000x64xf32, #tpu.memory_space<any>> -> memref<1x64xf32, #tpu.memory_space<any>>
      %c0_i32_20 = arith.constant 0 : i32
      %c0_i32_21 = arith.constant 0 : i32
      %38 = tpu.memref_slice %arg7[%c0_i32_20, %c0_i32_21] : memref<8x64xf32, #tpu.memory_space<vmem>> -> memref<1x64xf32, #tpu.memory_space<vmem>>
      %39 = tpu.memref_slice %arg11[%c0_i32_18] : memref<1x!tpu.dma_semaphore, #tpu.memory_space<semaphore_mem>> -> memref<1x!tpu.dma_semaphore, #tpu.memory_space<semaphore_mem>>
      %40 = tpu.memref_squeeze %39 : memref<1x!tpu.dma_semaphore, #tpu.memory_space<semaphore_mem>> -> memref<!tpu.dma_semaphore, #tpu.memory_space<semaphore_mem>>
      tpu.enqueue_dma source(%37 : memref<1x64xf32, #tpu.memory_space<any>>) target(%38 : memref<1x64xf32, #tpu.memory_space<vmem>>) target_semaphore(%40 : memref<!tpu.dma_semaphore, #tpu.memory_space<semaphore_mem>>)
      %c8_i32_22 = arith.constant 8 : i32
      %41 = arith.muli %arg0, %c8_i32_22 : i32
      %c1_i32_23 = arith.constant 1 : i32
      %42 = arith.addi %41, %c1_i32_23 : i32
      %43 = arith.index_cast %42 : i32 to index
      %44 = memref.load %arg2[%43] : memref<8xi32, #tpu.memory_space<smem>>
      %c0_i32_24 = arith.constant 0 : i32
      %c0_i32_25 = arith.constant 0 : i32
      %45 = tpu.memref_slice %arg3[%44, %c0_i32_25] : memref<1000x64xf32, #tpu.memory_space<any>> -> memref<1x64xf32, #tpu.memory_space<any>>
      %c1_i32_26 = arith.constant 1 : i32
      %c0_i32_27 = arith.constant 0 : i32
      %46 = tpu.memref_slice %arg7[%c1_i32_26, %c0_i32_27] : memref<8x64xf32, #tpu.memory_space<vmem>> -> memref<1x64xf32, #tpu.memory_space<vmem>>
      %47 = tpu.memref_slice %arg11[%c0_i32_24] : memref<1x!tpu.dma_semaphore, #tpu.memory_space<semaphore_mem>> -> memref<1x!tpu.dma_semaphore, #tpu.memory_space<semaphore_mem>>
      %48 = tpu.memref_squeeze %47 : memref<1x!tpu.dma_semaphore, #tpu.memory_space<semaphore_mem>> -> memref<!tpu.dma_semaphore, #tpu.memory_space<semaphore_mem>>
      tpu.enqueue_dma source(%45 : memref<1x64xf32, #tpu.memory_space<any>>) target(%46 : memref<1x64xf32, #tpu.memory_space<vmem>>) target_semaphore(%48 : memref<!tpu.dma_semaphore, #tpu.memory_space<semaphore_mem>>)
      %c8_i32_28 = arith.constant 8 : i32
      %49 = arith.muli %arg0, %c8_i32_28 : i32
      %c2_i32 = arith.constant 2 : i32
      %50 = arith.addi %49, %c2_i32 : i32
      %51 = arith.index_cast %50 : i32 to index
      %52 = memref.load %arg2[%51] : memref<8xi32, #tpu.memory_space<smem>>
      %c0_i32_29 = arith.constant 0 : i32
      %c0_i32_30 = arith.constant 0 : i32
      %53 = tpu.memref_slice %arg3[%52, %c0_i32_30] : memref<1000x64xf32, #tpu.memory_space<any>> -> memref<1x64xf32, #tpu.memory_space<any>>
      %c2_i32_31 = arith.constant 2 : i32
      %c0_i32_32 = arith.constant 0 : i32
      %54 = tpu.memref_slice %arg7[%c2_i32_31, %c0_i32_32] : memref<8x64xf32, #tpu.memory_space<vmem>> -> memref<1x64xf32, #tpu.memory_space<vmem>>
      %55 = tpu.memref_slice %arg11[%c0_i32_29] : memref<1x!tpu.dma_semaphore, #tpu.memory_space<semaphore_mem>> -> memref<1x!tpu.dma_semaphore, #tpu.memory_space<semaphore_mem>>
      %56 = tpu.memref_squeeze %55 : memref<1x!tpu.dma_semaphore, #tpu.memory_space<semaphore_mem>> -> memref<!tpu.dma_semaphore, #tpu.memory_space<semaphore_mem>>
      tpu.enqueue_dma source(%53 : memref<1x64xf32, #tpu.memory_space<any>>) target(%54 : memref<1x64xf32, #tpu.memory_space<vmem>>) target_semaphore(%56 : memref<!tpu.dma_semaphore, #tpu.memory_space<semaphore_mem>>)
      %c8_i32_33 = arith.constant 8 : i32
      %57 = arith.muli %arg0, %c8_i32_33 : i32
      %c3_i32 = arith.constant 3 : i32
      %58 = arith.addi %57, %c3_i32 : i32
      %59 = arith.index_cast %58 : i32 to index
      %60 = memref.load %arg2[%59] : memref<8xi32, #tpu.memory_space<smem>>
      %c0_i32_34 = arith.constant 0 : i32
      %c0_i32_35 = arith.constant 0 : i32
      %61 = tpu.memref_slice %arg3[%60, %c0_i32_35] : memref<1000x64xf32, #tpu.memory_space<any>> -> memref<1x64xf32, #tpu.memory_space<any>>
      %c3_i32_36 = arith.constant 3 : i32
      %c0_i32_37 = arith.constant 0 : i32
      %62 = tpu.memref_slice %arg7[%c3_i32_36, %c0_i32_37] : memref<8x64xf32, #tpu.memory_space<vmem>> -> memref<1x64xf32, #tpu.memory_space<vmem>>
      %63 = tpu.memref_slice %arg11[%c0_i32_34] : memref<1x!tpu.dma_semaphore, #tpu.memory_space<semaphore_mem>> -> memref<1x!tpu.dma_semaphore, #tpu.memory_space<semaphore_mem>>
      %64 = tpu.memref_squeeze %63 : memref<1x!tpu.dma_semaphore, #tpu.memory_space<semaphore_mem>> -> memref<!tpu.dma_semaphore, #tpu.memory_space<semaphore_mem>>
      tpu.enqueue_dma source(%61 : memref<1x64xf32, #tpu.memory_space<any>>) target(%62 : memref<1x64xf32, #tpu.memory_space<vmem>>) target_semaphore(%64 : memref<!tpu.dma_semaphore, #tpu.memory_space<semaphore_mem>>)
      %c8_i32_38 = arith.constant 8 : i32
      %65 = arith.muli %arg0, %c8_i32_38 : i32
      %c4_i32 = arith.constant 4 : i32
      %66 = arith.addi %65, %c4_i32 : i32
      %67 = arith.index_cast %66 : i32 to index
      %68 = memref.load %arg2[%67] : memref<8xi32, #tpu.memory_space<smem>>
      %c0_i32_39 = arith.constant 0 : i32
      %c0_i32_40 = arith.constant 0 : i32
      %69 = tpu.memref_slice %arg3[%68, %c0_i32_40] : memref<1000x64xf32, #tpu.memory_space<any>> -> memref<1x64xf32, #tpu.memory_space<any>>
      %c4_i32_41 = arith.constant 4 : i32
      %c0_i32_42 = arith.constant 0 : i32
      %70 = tpu.memref_slice %arg7[%c4_i32_41, %c0_i32_42] : memref<8x64xf32, #tpu.memory_space<vmem>> -> memref<1x64xf32, #tpu.memory_space<vmem>>
      %71 = tpu.memref_slice %arg11[%c0_i32_39] : memref<1x!tpu.dma_semaphore, #tpu.memory_space<semaphore_mem>> -> memref<1x!tpu.dma_semaphore, #tpu.memory_space<semaphore_mem>>
      %72 = tpu.memref_squeeze %71 : memref<1x!tpu.dma_semaphore, #tpu.memory_space<semaphore_mem>> -> memref<!tpu.dma_semaphore, #tpu.memory_space<semaphore_mem>>
      tpu.enqueue_dma source(%69 : memref<1x64xf32, #tpu.memory_space<any>>) target(%70 : memref<1x64xf32, #tpu.memory_space<vmem>>) target_semaphore(%72 : memref<!tpu.dma_semaphore, #tpu.memory_space<semaphore_mem>>)
      %c8_i32_43 = arith.constant 8 : i32
      %73 = arith.muli %arg0, %c8_i32_43 : i32
      %c5_i32 = arith.constant 5 : i32
      %74 = arith.addi %73, %c5_i32 : i32
      %75 = arith.index_cast %74 : i32 to index
      %76 = memref.load %arg2[%75] : memref<8xi32, #tpu.memory_space<smem>>
      %c0_i32_44 = arith.constant 0 : i32
      %c0_i32_45 = arith.constant 0 : i32
      %77 = tpu.memref_slice %arg3[%76, %c0_i32_45] : memref<1000x64xf32, #tpu.memory_space<any>> -> memref<1x64xf32, #tpu.memory_space<any>>
      %c5_i32_46 = arith.constant 5 : i32
      %c0_i32_47 = arith.constant 0 : i32
      %78 = tpu.memref_slice %arg7[%c5_i32_46, %c0_i32_47] : memref<8x64xf32, #tpu.memory_space<vmem>> -> memref<1x64xf32, #tpu.memory_space<vmem>>
      %79 = tpu.memref_slice %arg11[%c0_i32_44] : memref<1x!tpu.dma_semaphore, #tpu.memory_space<semaphore_mem>> -> memref<1x!tpu.dma_semaphore, #tpu.memory_space<semaphore_mem>>
      %80 = tpu.memref_squeeze %79 : memref<1x!tpu.dma_semaphore, #tpu.memory_space<semaphore_mem>> -> memref<!tpu.dma_semaphore, #tpu.memory_space<semaphore_mem>>
      tpu.enqueue_dma source(%77 : memref<1x64xf32, #tpu.memory_space<any>>) target(%78 : memref<1x64xf32, #tpu.memory_space<vmem>>) target_semaphore(%80 : memref<!tpu.dma_semaphore, #tpu.memory_space<semaphore_mem>>)
      %c8_i32_48 = arith.constant 8 : i32
      %81 = arith.muli %arg0, %c8_i32_48 : i32
      %c6_i32 = arith.constant 6 : i32
      %82 = arith.addi %81, %c6_i32 : i32
      %83 = arith.index_cast %82 : i32 to index
      %84 = memref.load %arg2[%83] : memref<8xi32, #tpu.memory_space<smem>>
      %c0_i32_49 = arith.constant 0 : i32
      %c0_i32_50 = arith.constant 0 : i32
      %85 = tpu.memref_slice %arg3[%84, %c0_i32_50] : memref<1000x64xf32, #tpu.memory_space<any>> -> memref<1x64xf32, #tpu.memory_space<any>>
      %c6_i32_51 = arith.constant 6 : i32
      %c0_i32_52 = arith.constant 0 : i32
      %86 = tpu.memref_slice %arg7[%c6_i32_51, %c0_i32_52] : memref<8x64xf32, #tpu.memory_space<vmem>> -> memref<1x64xf32, #tpu.memory_space<vmem>>
      %87 = tpu.memref_slice %arg11[%c0_i32_49] : memref<1x!tpu.dma_semaphore, #tpu.memory_space<semaphore_mem>> -> memref<1x!tpu.dma_semaphore, #tpu.memory_space<semaphore_mem>>
      %88 = tpu.memref_squeeze %87 : memref<1x!tpu.dma_semaphore, #tpu.memory_space<semaphore_mem>> -> memref<!tpu.dma_semaphore, #tpu.memory_space<semaphore_mem>>
      tpu.enqueue_dma source(%85 : memref<1x64xf32, #tpu.memory_space<any>>) target(%86 : memref<1x64xf32, #tpu.memory_space<vmem>>) target_semaphore(%88 : memref<!tpu.dma_semaphore, #tpu.memory_space<semaphore_mem>>)
      %c8_i32_53 = arith.constant 8 : i32
      %89 = arith.muli %arg0, %c8_i32_53 : i32
      %c7_i32 = arith.constant 7 : i32
      %90 = arith.addi %89, %c7_i32 : i32
      %91 = arith.index_cast %90 : i32 to index
      %92 = memref.load %arg2[%91] : memref<8xi32, #tpu.memory_space<smem>>
      %c0_i32_54 = arith.constant 0 : i32
      %c0_i32_55 = arith.constant 0 : i32
      %93 = tpu.memref_slice %arg3[%92, %c0_i32_55] : memref<1000x64xf32, #tpu.memory_space<any>> -> memref<1x64xf32, #tpu.memory_space<any>>
      %c7_i32_56 = arith.constant 7 : i32
      %c0_i32_57 = arith.constant 0 : i32
      %94 = tpu.memref_slice %arg7[%c7_i32_56, %c0_i32_57] : memref<8x64xf32, #tpu.memory_space<vmem>> -> memref<1x64xf32, #tpu.memory_space<vmem>>
      %95 = tpu.memref_slice %arg11[%c0_i32_54] : memref<1x!tpu.dma_semaphore, #tpu.memory_space<semaphore_mem>> -> memref<1x!tpu.dma_semaphore, #tpu.memory_space<semaphore_mem>>
      %96 = tpu.memref_squeeze %95 : memref<1x!tpu.dma_semaphore, #tpu.memory_space<semaphore_mem>> -> memref<!tpu.dma_semaphore, #tpu.memory_space<semaphore_mem>>
      tpu.enqueue_dma source(%93 : memref<1x64xf32, #tpu.memory_space<any>>) target(%94 : memref<1x64xf32, #tpu.memory_space<vmem>>) target_semaphore(%96 : memref<!tpu.dma_semaphore, #tpu.memory_space<semaphore_mem>>)
      %c0_i32_58 = arith.constant 0 : i32
      %c0_i32_59 = arith.constant 0 : i32
      %97 = tpu.memref_slice %arg3[%36, %c0_i32_59] : memref<1000x64xf32, #tpu.memory_space<any>> -> memref<1x64xf32, #tpu.memory_space<any>>
      %c0_i32_60 = arith.constant 0 : i32
      %c0_i32_61 = arith.constant 0 : i32
      %98 = tpu.memref_slice %arg7[%c0_i32_60, %c0_i32_61] : memref<8x64xf32, #tpu.memory_space<vmem>> -> memref<1x64xf32, #tpu.memory_space<vmem>>
      %99 = tpu.memref_slice %arg11[%c0_i32_58] : memref<1x!tpu.dma_semaphore, #tpu.memory_space<semaphore_mem>> -> memref<1x!tpu.dma_semaphore, #tpu.memory_space<semaphore_mem>>
      %100 = tpu.memref_squeeze %99 : memref<1x!tpu.dma_semaphore, #tpu.memory_space<semaphore_mem>> -> memref<!tpu.dma_semaphore, #tpu.memory_space<semaphore_mem>>
      tpu.wait_dma2 semaphore(%100 : memref<!tpu.dma_semaphore, #tpu.memory_space<semaphore_mem>>) src(%97 : memref<1x64xf32, #tpu.memory_space<any>>) dst(%98 : memref<1x64xf32, #tpu.memory_space<vmem>>)
      %c0_i32_62 = arith.constant 0 : i32
      %c0_i32_63 = arith.constant 0 : i32
      %101 = tpu.memref_slice %arg3[%44, %c0_i32_63] : memref<1000x64xf32, #tpu.memory_space<any>> -> memref<1x64xf32, #tpu.memory_space<any>>
      %c1_i32_64 = arith.constant 1 : i32
      %c0_i32_65 = arith.constant 0 : i32
      %102 = tpu.memref_slice %arg7[%c1_i32_64, %c0_i32_65] : memref<8x64xf32, #tpu.memory_space<vmem>> -> memref<1x64xf32, #tpu.memory_space<vmem>>
      %103 = tpu.memref_slice %arg11[%c0_i32_62] : memref<1x!tpu.dma_semaphore, #tpu.memory_space<semaphore_mem>> -> memref<1x!tpu.dma_semaphore, #tpu.memory_space<semaphore_mem>>
      %104 = tpu.memref_squeeze %103 : memref<1x!tpu.dma_semaphore, #tpu.memory_space<semaphore_mem>> -> memref<!tpu.dma_semaphore, #tpu.memory_space<semaphore_mem>>
      tpu.wait_dma2 semaphore(%104 : memref<!tpu.dma_semaphore, #tpu.memory_space<semaphore_mem>>) src(%101 : memref<1x64xf32, #tpu.memory_space<any>>) dst(%102 : memref<1x64xf32, #tpu.memory_space<vmem>>)
      %c0_i32_66 = arith.constant 0 : i32
      %c0_i32_67 = arith.constant 0 : i32
      %105 = tpu.memref_slice %arg3[%52, %c0_i32_67] : memref<1000x64xf32, #tpu.memory_space<any>> -> memref<1x64xf32, #tpu.memory_space<any>>
      %c2_i32_68 = arith.constant 2 : i32
      %c0_i32_69 = arith.constant 0 : i32
      %106 = tpu.memref_slice %arg7[%c2_i32_68, %c0_i32_69] : memref<8x64xf32, #tpu.memory_space<vmem>> -> memref<1x64xf32, #tpu.memory_space<vmem>>
      %107 = tpu.memref_slice %arg11[%c0_i32_66] : memref<1x!tpu.dma_semaphore, #tpu.memory_space<semaphore_mem>> -> memref<1x!tpu.dma_semaphore, #tpu.memory_space<semaphore_mem>>
      %108 = tpu.memref_squeeze %107 : memref<1x!tpu.dma_semaphore, #tpu.memory_space<semaphore_mem>> -> memref<!tpu.dma_semaphore, #tpu.memory_space<semaphore_mem>>
      tpu.wait_dma2 semaphore(%108 : memref<!tpu.dma_semaphore, #tpu.memory_space<semaphore_mem>>) src(%105 : memref<1x64xf32, #tpu.memory_space<any>>) dst(%106 : memref<1x64xf32, #tpu.memory_space<vmem>>)
      %c0_i32_70 = arith.constant 0 : i32
      %c0_i32_71 = arith.constant 0 : i32
      %109 = tpu.memref_slice %arg3[%60, %c0_i32_71] : memref<1000x64xf32, #tpu.memory_space<any>> -> memref<1x64xf32, #tpu.memory_space<any>>
      %c3_i32_72 = arith.constant 3 : i32
      %c0_i32_73 = arith.constant 0 : i32
      %110 = tpu.memref_slice %arg7[%c3_i32_72, %c0_i32_73] : memref<8x64xf32, #tpu.memory_space<vmem>> -> memref<1x64xf32, #tpu.memory_space<vmem>>
      %111 = tpu.memref_slice %arg11[%c0_i32_70] : memref<1x!tpu.dma_semaphore, #tpu.memory_space<semaphore_mem>> -> memref<1x!tpu.dma_semaphore, #tpu.memory_space<semaphore_mem>>
      %112 = tpu.memref_squeeze %111 : memref<1x!tpu.dma_semaphore, #tpu.memory_space<semaphore_mem>> -> memref<!tpu.dma_semaphore, #tpu.memory_space<semaphore_mem>>
      tpu.wait_dma2 semaphore(%112 : memref<!tpu.dma_semaphore, #tpu.memory_space<semaphore_mem>>) src(%109 : memref<1x64xf32, #tpu.memory_space<any>>) dst(%110 : memref<1x64xf32, #tpu.memory_space<vmem>>)
      %c0_i32_74 = arith.constant 0 : i32
      %c0_i32_75 = arith.constant 0 : i32
      %113 = tpu.memref_slice %arg3[%68, %c0_i32_75] : memref<1000x64xf32, #tpu.memory_space<any>> -> memref<1x64xf32, #tpu.memory_space<any>>
      %c4_i32_76 = arith.constant 4 : i32
      %c0_i32_77 = arith.constant 0 : i32
      %114 = tpu.memref_slice %arg7[%c4_i32_76, %c0_i32_77] : memref<8x64xf32, #tpu.memory_space<vmem>> -> memref<1x64xf32, #tpu.memory_space<vmem>>
      %115 = tpu.memref_slice %arg11[%c0_i32_74] : memref<1x!tpu.dma_semaphore, #tpu.memory_space<semaphore_mem>> -> memref<1x!tpu.dma_semaphore, #tpu.memory_space<semaphore_mem>>
      %116 = tpu.memref_squeeze %115 : memref<1x!tpu.dma_semaphore, #tpu.memory_space<semaphore_mem>> -> memref<!tpu.dma_semaphore, #tpu.memory_space<semaphore_mem>>
      tpu.wait_dma2 semaphore(%116 : memref<!tpu.dma_semaphore, #tpu.memory_space<semaphore_mem>>) src(%113 : memref<1x64xf32, #tpu.memory_space<any>>) dst(%114 : memref<1x64xf32, #tpu.memory_space<vmem>>)
      %c0_i32_78 = arith.constant 0 : i32
      %c0_i32_79 = arith.constant 0 : i32
      %117 = tpu.memref_slice %arg3[%76, %c0_i32_79] : memref<1000x64xf32, #tpu.memory_space<any>> -> memref<1x64xf32, #tpu.memory_space<any>>
      %c5_i32_80 = arith.constant 5 : i32
      %c0_i32_81 = arith.constant 0 : i32
      %118 = tpu.memref_slice %arg7[%c5_i32_80, %c0_i32_81] : memref<8x64xf32, #tpu.memory_space<vmem>> -> memref<1x64xf32, #tpu.memory_space<vmem>>
      %119 = tpu.memref_slice %arg11[%c0_i32_78] : memref<1x!tpu.dma_semaphore, #tpu.memory_space<semaphore_mem>> -> memref<1x!tpu.dma_semaphore, #tpu.memory_space<semaphore_mem>>
      %120 = tpu.memref_squeeze %119 : memref<1x!tpu.dma_semaphore, #tpu.memory_space<semaphore_mem>> -> memref<!tpu.dma_semaphore, #tpu.memory_space<semaphore_mem>>
      tpu.wait_dma2 semaphore(%120 : memref<!tpu.dma_semaphore, #tpu.memory_space<semaphore_mem>>) src(%117 : memref<1x64xf32, #tpu.memory_space<any>>) dst(%118 : memref<1x64xf32, #tpu.memory_space<vmem>>)
      %c0_i32_82 = arith.constant 0 : i32
      %c0_i32_83 = arith.constant 0 : i32
      %121 = tpu.memref_slice %arg3[%84, %c0_i32_83] : memref<1000x64xf32, #tpu.memory_space<any>> -> memref<1x64xf32, #tpu.memory_space<any>>
      %c6_i32_84 = arith.constant 6 : i32
      %c0_i32_85 = arith.constant 0 : i32
      %122 = tpu.memref_slice %arg7[%c6_i32_84, %c0_i32_85] : memref<8x64xf32, #tpu.memory_space<vmem>> -> memref<1x64xf32, #tpu.memory_space<vmem>>
      %123 = tpu.memref_slice %arg11[%c0_i32_82] : memref<1x!tpu.dma_semaphore, #tpu.memory_space<semaphore_mem>> -> memref<1x!tpu.dma_semaphore, #tpu.memory_space<semaphore_mem>>
      %124 = tpu.memref_squeeze %123 : memref<1x!tpu.dma_semaphore, #tpu.memory_space<semaphore_mem>> -> memref<!tpu.dma_semaphore, #tpu.memory_space<semaphore_mem>>
      tpu.wait_dma2 semaphore(%124 : memref<!tpu.dma_semaphore, #tpu.memory_space<semaphore_mem>>) src(%121 : memref<1x64xf32, #tpu.memory_space<any>>) dst(%122 : memref<1x64xf32, #tpu.memory_space<vmem>>)
      %c0_i32_86 = arith.constant 0 : i32
      %c0_i32_87 = arith.constant 0 : i32
      %125 = tpu.memref_slice %arg3[%92, %c0_i32_87] : memref<1000x64xf32, #tpu.memory_space<any>> -> memref<1x64xf32, #tpu.memory_space<any>>
      %c7_i32_88 = arith.constant 7 : i32
      %c0_i32_89 = arith.constant 0 : i32
      %126 = tpu.memref_slice %arg7[%c7_i32_88, %c0_i32_89] : memref<8x64xf32, #tpu.memory_space<vmem>> -> memref<1x64xf32, #tpu.memory_space<vmem>>
      %127 = tpu.memref_slice %arg11[%c0_i32_86] : memref<1x!tpu.dma_semaphore, #tpu.memory_space<semaphore_mem>> -> memref<1x!tpu.dma_semaphore, #tpu.memory_space<semaphore_mem>>
      %128 = tpu.memref_squeeze %127 : memref<1x!tpu.dma_semaphore, #tpu.memory_space<semaphore_mem>> -> memref<!tpu.dma_semaphore, #tpu.memory_space<semaphore_mem>>
      tpu.wait_dma2 semaphore(%128 : memref<!tpu.dma_semaphore, #tpu.memory_space<semaphore_mem>>) src(%125 : memref<1x64xf32, #tpu.memory_space<any>>) dst(%126 : memref<1x64xf32, #tpu.memory_space<vmem>>)
      %c0_90 = arith.constant 0 : index
      %c0_91 = arith.constant 0 : index
      %129 = vector.load %arg7[%c0_90, %c0_91] : memref<8x64xf32, #tpu.memory_space<vmem>>, vector<8x64xf32>
      %130 = arith.truncf %129 : vector<8x64xf32> to vector<8x64xbf16>
      %c0_92 = arith.constant 0 : index
      %c0_93 = arith.constant 0 : index
      %131 = vector.load %arg8[%c0_92, %c0_93] : memref<8x64xbf16, #tpu.memory_space<vmem>>, vector<8x64xbf16>
      tpu.vector_store %arg8[%c0_92, %c0_93], %130 {strides = array<i32>} : memref<8x64xbf16, #tpu.memory_space<vmem>>, vector<8x64xbf16>,
      %cst_94 = arith.constant -1.000000e+30 : f32
      %132 = vector.broadcast %cst_94 : f32 to vector<8x1xf32>
      %c0_95 = arith.constant 0 : index
      %c0_96 = arith.constant 0 : index
      %133 = vector.load %arg9[%c0_95, %c0_96] : memref<8x1xf32, #tpu.memory_space<vmem>>, vector<8x1xf32>
      tpu.vector_store %arg9[%c0_95, %c0_96], %132 {strides = array<i32>} : memref<8x1xf32, #tpu.memory_space<vmem>>, vector<8x1xf32>,
      %cst_97 = arith.constant 0.000000e+00 : f32
      %134 = vector.broadcast %cst_97 : f32 to vector<8x1xf32>
      %c0_98 = arith.constant 0 : index
      %c0_99 = arith.constant 0 : index
      %135 = vector.load %arg10[%c0_98, %c0_99] : memref<8x1xf32, #tpu.memory_space<vmem>>, vector<8x1xf32>
      tpu.vector_store %arg10[%c0_98, %c0_99], %134 {strides = array<i32>} : memref<8x1xf32, #tpu.memory_space<vmem>>, vector<8x1xf32>,
    } else {
    }
    %c512_i32 = arith.constant 512 : i32
    %3 = arith.muli %arg1, %c512_i32 : i32
    %4 = tpu.assume_multiple %3, 128 : i32
    %c0 = arith.constant 0 : index
    %c0_1 = arith.constant 0 : index
    %5 = vector.load %arg8[%c0, %c0_1] : memref<8x64xbf16, #tpu.memory_space<vmem>>, vector<8x64xbf16>
    %c0_2 = arith.constant 0 : index
    %c0_3 = arith.constant 0 : index
    %6 = vector.load %arg4[%c0_2, %c0_3] : memref<512x64xbf16, #tpu.memory_space<vmem>>, vector<512x64xbf16>
    %cst = arith.constant dense<0.000000e+00> : vector<8x512xf32>
    %7 = tpu.matmul %5, %6, %cst {dimension_numbers = #tpu.dot_dimension_numbers<[1], [1], [0], [0], [0, 0, 1, 0], [], []>} : vector<8x64xbf16>, vector<512x64xbf16>, vector<8x512xf32> -> vector<8x512xf32>
    %c0_4 = arith.constant 0 : index
    %8 = arith.index_cast %4 : i32 to index
    %9 = vector.load %arg5[%c0_4, %8] : memref<1x1024xf32, #tpu.memory_space<vmem>>, vector<1x512xf32>
    %10 = vector.broadcast %9 : vector<1x512xf32> to vector<8x512xf32>
    %11 = arith.addf %7, %10 : vector<8x512xf32>
    %c0_5 = arith.constant 0 : index
    %c0_6 = arith.constant 0 : index
    %12 = vector.load %arg9[%c0_5, %c0_6] : memref<8x1xf32, #tpu.memory_space<vmem>>, vector<8x1xf32>
    %cst_7 = arith.constant dense<0xFF800000> : vector<8xf32>
    %13 = vector.multi_reduction <maximumf>, %11, %cst_7 [1] : vector<8x512xf32> to vector<8xf32>
    %14 = vector.shape_cast %13 : vector<8xf32> to vector<8x1xf32>
    %15 = arith.maximumf %12, %14 : vector<8x1xf32>
    %c0_8 = arith.constant 0 : index
    %c0_9 = arith.constant 0 : index
    %16 = vector.load %arg10[%c0_8, %c0_9] : memref<8x1xf32, #tpu.memory_space<vmem>>, vector<8x1xf32>
    %17 = arith.subf %12, %15 : vector<8x1xf32>
    %18 = math.exp %17 : vector<8x1xf32>
    %19 = arith.mulf %16, %18 : vector<8x1xf32>
    %20 = vector.broadcast %15 : vector<8x1xf32> to vector<8x512xf32>
    %21 = arith.subf %11, %20 : vector<8x512xf32>
    %22 = math.exp %21 : vector<8x512xf32>
    %cst_10 = arith.constant dense<0.000000e+00> : vector<8xf32>
    %23 = vector.multi_reduction <add>, %22, %cst_10 [1] : vector<8x512xf32> to vector<8xf32>
    %24 = vector.shape_cast %23 : vector<8xf32> to vector<8x1xf32>
    %25 = arith.addf %19, %24 : vector<8x1xf32>
    %c0_11 = arith.constant 0 : index
    %c0_12 = arith.constant 0 : index
    %26 = vector.load %arg10[%c0_11, %c0_12] : memref<8x1xf32, #tpu.memory_space<vmem>>, vector<8x1xf32>
    tpu.vector_store %arg10[%c0_11, %c0_12], %25 {strides = array<i32>} : memref<8x1xf32, #tpu.memory_space<vmem>>, vector<8x1xf32>,
    %c0_13 = arith.constant 0 : index
    %c0_14 = arith.constant 0 : index
    %27 = vector.load %arg9[%c0_13, %c0_14] : memref<8x1xf32, #tpu.memory_space<vmem>>, vector<8x1xf32>
    tpu.vector_store %arg9[%c0_13, %c0_14], %15 {strides = array<i32>} : memref<8x1xf32, #tpu.memory_space<vmem>>, vector<8x1xf32>,
    %c0_15 = arith.constant 0 : index
    %28 = arith.index_cast %4 : i32 to index
    %29 = vector.load %arg6[%c0_15, %28] : memref<8x1024xf32, #tpu.memory_space<vmem>>, vector<8x512xf32>
    tpu.vector_store %arg6[%c0_15, %28], %11 {strides = array<i32>} : memref<8x1024xf32, #tpu.memory_space<vmem>>, vector<8x512xf32>,
    %c1_i32 = arith.constant 1 : i32
    %30 = arith.cmpi eq, %arg1, %c1_i32 : i32
    %31 = arith.extui %30 : i1 to i32
    %c0_i32_16 = arith.constant 0 : i32
    %32 = arith.cmpi ne, %31, %c0_i32_16 : i32
    scf.if %32 {
      %c0_17 = arith.constant 0 : index
      %c0_18 = arith.constant 0 : index
      %33 = vector.load %arg9[%c0_17, %c0_18] : memref<8x1xf32, #tpu.memory_space<vmem>>, vector<8x1xf32>
      %c0_19 = arith.constant 0 : index
      %c0_20 = arith.constant 0 : index
      %34 = vector.load %arg10[%c0_19, %c0_20] : memref<8x1xf32, #tpu.memory_space<vmem>>, vector<8x1xf32>
      %35 = math.log %34 : vector<8x1xf32>
      %36 = arith.addf %33, %35 : vector<8x1xf32>
      %c0_21 = arith.constant 0 : index
      %c0_22 = arith.constant 0 : index
      %37 = vector.load %arg6[%c0_21, %c0_22] : memref<8x1024xf32, #tpu.memory_space<vmem>>, vector<8x1024xf32>
      %38 = vector.broadcast %36 : vector<8x1xf32> to vector<8x1024xf32>
      %39 = arith.subf %37, %38 : vector<8x1024xf32>
      %c0_23 = arith.constant 0 : index
      %c0_24 = arith.constant 0 : index
      %40 = vector.load %arg6[%c0_23, %c0_24] : memref<8x1024xf32, #tpu.memory_space<vmem>>, vector<8x1024xf32>
      tpu.vector_store %arg6[%c0_23, %c0_24], %39 {strides = array<i32>} : memref<8x1024xf32, #tpu.memory_space<vmem>>, vector<8x1024xf32>,
    } else {
    }
    return
  }
  func.func @transform_1(%arg0: i32, %arg1: i32, %arg2: memref<8xi32, #tpu.memory_space<smem>>) -> (i32, i32) {
    %c0_i32 = arith.constant 0 : i32
    %c0_i32_0 = arith.constant 0 : i32
    return %arg1, %c0_i32 : i32, i32
  }
  func.func @transform_2(%arg0: i32, %arg1: i32, %arg2: memref<8xi32, #tpu.memory_space<smem>>) -> (i32, i32) {
    %c0_i32 = arith.constant 0 : i32
    %c0_i32_0 = arith.constant 0 : i32
    %c0_i32_1 = arith.constant 0 : i32
    return %c0_i32, %c0_i32_0 : i32, i32
  }
  func.func @transform_3(%arg0: i32, %arg1: i32, %arg2: memref<8xi32, #tpu.memory_space<smem>>) -> (i32, i32) {
    %c0_i32 = arith.constant 0 : i32
    %c0_i32_0 = arith.constant 0 : i32
    return %arg0, %c0_i32 : i32, i32
  }
}

</mosaic_0001>

<llo_original>
// kernel: skipgram_forward.1
$region0: #{skipgram_forward.1}
  #allocation0 [shape = 'u32[]', space=smem, size = 0x4, offset = 0x4, fixed_abs, tag = 'smem constant byte address 0x4 - core index']
  #allocation1 [shape = 'u32[144,128]{1,0:T(1,128)}', space=vmem, size = 0x12000, scoped, tag = 'internal scratch']
  #allocation2 [shape = 'f32[8,64]{1,0:T(8,128)}', space=vmem, size = 0x1000, scoped, tag = 'scratch operand']
  #allocation3 [shape = 'bf16[8,64]{1,0:T(8,128)(2,1)}', space=vmem, size = 0x800, scoped, tag = 'scratch operand']
  #allocation4 [shape = 'f32[8,1]{1,0:T(8,128)}', space=vmem, size = 0x1000, scoped, tag = 'scratch operand']
  #allocation5 [shape = 'f32[8,1]{1,0:T(8,128)}', space=vmem, size = 0x1000, scoped, tag = 'scratch operand']
  #allocation6 [shape = 's32[1]{0}', space=sflag, size = 0x4, scoped, tag = 'scratch operand']
  #allocation7 [shape = 's32[1]{0}', space=sflag, size = 0x4, scoped, tag = 'scoped memory for skipgram_forward.1']
  #allocation8 [shape = 'u8[512]{0}', space=smem, size = 0x200, scoped, tag = 'prefetched SMEM operand 0']
  #allocation11 [shape = 's32[]', space=sflag, size = 0x4, offset = 0, fixed_abs, tag = 'sflag constant byte address 0x0 - dummy sync flag']
  #allocation12 [shape = 's32[]', space=sflag, size = 0x4, offset = 0, fixed_abs, tag = 'sflag constant byte address 0x0 - dummy sync flag']
  #allocation13 [shape = 's32[]', space=sflag, size = 0x4, offset = 0, fixed_abs, tag = 'sflag constant byte address 0x0 - dummy sync flag']
  #allocation14 [shape = 's32[]', space=sflag, size = 0x4, offset = 0, fixed_abs, tag = 'sflag constant byte address 0x0 - dummy sync flag']
  #allocation15 [shape = 's32[]', space=sflag, size = 0x4, offset = 0, fixed_abs, tag = 'sflag constant byte address 0x0 - dummy sync flag']
  #allocation16 [shape = 's32[]', space=sflag, size = 0x4, offset = 0, fixed_abs, tag = 'sflag constant byte address 0x0 - dummy sync flag']
  #allocation17 [shape = 's32[]', space=sflag, size = 0x4, offset = 0, fixed_abs, tag = 'sflag constant byte address 0x0 - dummy sync flag']
  #allocation18 [shape = 's32[]', space=sflag, size = 0x4, offset = 0, fixed_abs, tag = 'sflag constant byte address 0x0 - dummy sync flag']
  %s0 = inlined_call_operand.vmem [shape: s32[8], index: 0, kind: input, shape index: {}]
  %s1 = inlined_call_operand.vmem [shape: f32[1000,64], index: 1, kind: input, shape index: {}]
  %s2 = inlined_call_operand.vmem [shape: bf16[1024,64], index: 2, kind: input, shape index: {}]
  %s3 = inlined_call_operand.vmem [shape: f32[1,1024], index: 3, kind: input, shape index: {}]
  %s4 = inlined_call_operand.hbm [shape: f32[8,1024], index: 4, kind: output, shape index: {}]
  %s5 = sld [smem:[#allocation0]]
  $region289: #{skipgram_forward.1} parent=0
    _
  %s7 = ssub.s32 1, %s5
  %s8 = scalar_select 0, %s7, %s5
  %s9 = sshll.u32 %s0, 4
  %s10 = int_to_ptr.vmem [resolvable:$true] %s9
  %12 = dma.vmem_to_smem %s10, 16, [#allocation8], [#allocation7]
  %13 = dma.done [#allocation7], 16
  %14 = sfence
  $region1: #{skipgram_forward.1} parent=0
    #allocation9 [shape = 'u8[32768]{0}', space=vmem, size = 0x8000, scoped, tag = 'output window, operand 0, single buffered']
    #allocation10 [shape = 's32[2]{0}', space=sflag, size = 0x8, scoped, tag = 'scoped memory for skipgram_forward.1']
    %15 = vsyncpa [#allocation10], 0
    loop: start=0, step=1, limit=4
    $region2: #{skipgram_forward.1} parent=1 // loop_pre_header
      _
    $region3: #{skipgram_forward.1} parent=1 // loop_header
      %s17 = sphi 0, %s21
      %p18 = scmp.ge.s32.totalorder %s17, 4
      %s24 = sphi 0, %s36
      %s25 = sphi 0, %s32
      %s26 = sphi 0, %s24
      %s27 = sphi 0, %s25
      %s28 = sphi 0, %s26
      %s29 = sphi 0, %s27
      %s39 = sphi 0, %s41
      %s42 = sphi 0, %s39
      %s43 = sphi 0, %s42
      %s59 = sphi 0, %s43
      %s63 = sphi 0, %s63
      %s65 = sphi 0, %s63
      %s66 = sphi 0, %s65
      %s80 = sphi 0, %s66
      %s86 = sphi 0, %s88
      %s89 = sphi 0, %s86
      %s90 = sphi 0, %s89
      %s106 = sphi 0, %s90
    $region4: #{skipgram_forward.1} parent=1 // loop_header_branch
      %20 = sbr.rel (%p18) target = $region8
    $region5: #{skipgram_forward.1} parent=1 // loop_body
      %s22 = ssub.s32 %s17, 1
      %s23 = ssub.s32 %s17, 2
      %s30 = sadd.s32 1, %s25
      %p31 = scmp.ge.s32.totalorder %s30, 2
      %s32 = scalar_select %p31, 0, %s30
      %s33 = sadd.s32 1, %s24
      %s34 = scalar_select %p31, %s33, %s24
      %p35 = scmp.ge.s32.totalorder %s34, 1
      %s36 = scalar_select %p35, 0, %s34
      %s37 = ssub.s32 %s25, %s32
      %p38 = scmp.eq.s32.totalorder %s37, 0
      %s40 = sadd.s32 %s39, 1
      %s41 = scalar_select %p38, %s39, %s40
      %p44 = pneg %p38
      %p45 = scmp.eq.s32.totalorder %s17, 1
      %p46 = por %p44, %p45
      %p47 = scmp.ne.s32.totalorder %s39, %s42
      %p48 = scmp.eq.s32.totalorder %s17, 0
      %p49 = por %p47, %p48
      %p50 = scmp.ne.s32.totalorder %s39, %s42
      %p51 = scmp.eq.s32.totalorder %s22, 1
      %p52 = por %p50, %p51
      %p53 = scmp.ne.s32.totalorder %s42, %s43
      %p54 = scmp.eq.s32.totalorder %s22, 0
      %p55 = por %p53, %p54
      %p56 = scmp.ne.s32.totalorder %s42, %s43
      %p57 = scmp.eq.s32.totalorder %s23, 1
      %p58 = por %p56, %p57
      %p60 = scmp.ne.s32.totalorder %s43, %s59
      %p61 = scmp.eq.s32.totalorder %s23, 0
      %p62 = por %p60, %p61
      %s64 = sadd.s32 %s63, 1
      %p67 = scmp.eq.s32.totalorder %s17, 1
      %p68 = scmp.ne.s32.totalorder %s63, %s65
      %p69 = scmp.eq.s32.totalorder %s17, 0
      %p70 = por %p68, %p69
      %p71 = scmp.ne.s32.totalorder %s63, %s65
      %p72 = scmp.eq.s32.totalorder %s22, 1
      %p73 = por %p71, %p72
      %p74 = scmp.ne.s32.totalorder %s65, %s66
      %p75 = scmp.eq.s32.totalorder %s22, 0
      %p76 = por %p74, %p75
      %p77 = scmp.ne.s32.totalorder %s65, %s66
      %p78 = scmp.eq.s32.totalorder %s23, 1
      %p79 = por %p77, %p78
      %p81 = scmp.ne.s32.totalorder %s66, %s80
      %p82 = scmp.eq.s32.totalorder %s23, 0
      %p83 = por %p81, %p82
      %s84 = ssub.s32 %s24, %s36
      %p85 = scmp.eq.s32.totalorder %s84, 0
      %s87 = sadd.s32 %s86, 1
      %s88 = scalar_select %p85, %s86, %s87
      %p91 = pneg %p85
      %p92 = scmp.eq.s32.totalorder %s17, 1
      %p93 = por %p91, %p92
      %p94 = scmp.ne.s32.totalorder %s86, %s89
      %p95 = scmp.eq.s32.totalorder %s17, 0
      %p96 = por %p94, %p95
      %p97 = scmp.ne.s32.totalorder %s86, %s89
      %p98 = scmp.eq.s32.totalorder %s22, 1
      %p99 = por %p97, %p98
      %p100 = scmp.ne.s32.totalorder %s89, %s90
      %p101 = scmp.eq.s32.totalorder %s22, 0
      %p102 = por %p100, %p101
      %p103 = scmp.ne.s32.totalorder %s89, %s90
      %p104 = scmp.eq.s32.totalorder %s23, 1
      %p105 = por %p103, %p104
      %p107 = scmp.ne.s32.totalorder %s90, %s106
      %p108 = scmp.eq.s32.totalorder %s23, 0
      %p109 = por %p107, %p108
      %p110 = scmp.le.s32.totalorder 1, %s17
      %p111 = scmp.lt.s32.totalorder %s17, 3
      %p112 = pnand %p110, %p111
      %p113 = pneg %p112
      // Predicated region
      $region9: #{skipgram_forward.1} parent=5 // pred_check
        _
      $region10: #{skipgram_forward.1} parent=5 // pred_check_branch
        %115 = sbr.rel (%p112) target = $region12
      $region11: #{skipgram_forward.1} parent=5 // pred_region
        %s116 = ssub.s32 %s17, 1
        // Predicated region
        $region13: #{skipgram_forward.1} parent=11 // pred_check
          %p117 = pneg %p76
        $region14: #{skipgram_forward.1} parent=11 // pred_check_branch
          %119 = sbr.rel (%p117) target = $region16
        $region15: #{skipgram_forward.1} parent=11 // pred_region
          _
        $region16: #{skipgram_forward.1} parent=11 // pred_fallthru
          _
      $region12: #{skipgram_forward.1} parent=5 // pred_fallthru
        _
      %p120 = scmp.lt.s32.totalorder %s17, 2
      // Predicated region
      $region17: #{skipgram_forward.1} parent=5 // pred_check
        %p121 = pneg %p120
      $region18: #{skipgram_forward.1} parent=5 // pred_check_branch
        %123 = sbr.rel (%p121) target = $region20
      $region19: #{skipgram_forward.1} parent=5 // pred_region
        // Predicated region
        $region21: #{skipgram_forward.1} parent=19 // pred_check
          %p124 = pneg %p49
        $region22: #{skipgram_forward.1} parent=19 // pred_check_branch
          %126 = sbr.rel (%p124) target = $region24
        $region23: #{skipgram_forward.1} parent=19 // pred_region
          %s127 = smul.u32 64, %s25
          %p128 = scmp.lt.s32.totalorder %s127, 127
          %s129 = scalar_select %p128, %s127, 127
          %s130 = smul.addr %s129, 4
          %s131 = scalar_lea.vmem %s2, %s130
          %s132 = smul.u32 64, %s25
        $region24: #{skipgram_forward.1} parent=19 // pred_fallthru
          _
      $region20: #{skipgram_forward.1} parent=5 // pred_fallthru
        _
      %p133 = scmp.le.s32.totalorder 1, %s17
      %p134 = scmp.lt.s32.totalorder %s17, 3
      %p135 = pnand %p133, %p134
      %p136 = pneg %p135
      // Predicated region
      $region25: #{skipgram_forward.1} parent=5 // pred_check
        _
      $region26: #{skipgram_forward.1} parent=5 // pred_check_branch
        %138 = sbr.rel (%p135) target = $region28
      $region27: #{skipgram_forward.1} parent=5 // pred_region
        %s139 = ssub.s32 %s17, 1
        %s140 = smul.u32 64, %s27
        %p141 = scmp.lt.s32.totalorder %s140, 127
        %s142 = scalar_select %p141, %s140, 127
        %s143 = smul.addr %s142, 4
        %s144 = scalar_lea.vmem %s2, %s143
        %p145 = pneg %p55
        %p146 = pneg %p52
        %p147 = pneg %p76
        %p148 = pneg %p73
        %p149 = pneg %p102
        %p150 = pneg %p99
        %s151 = smul.u32 64, %s27
        %p152 = scmp.lt.s32.totalorder %s151, 127
        %s153 = scalar_select %p152, %s151, 127
        %s154 = smul.addr %s153, 4
        %s155 = scalar_lea.vmem %s2, %s154
        %s156 = smul.u32 64, %s27
        %p158 = scmp.eq.s32.totalorder %s27, 0
        // Predicated region
        $region29: #{skipgram_forward.1} parent=27 // pred_check
          %p159 = pneg %p158
        $region30: #{skipgram_forward.1} parent=27 // pred_check_branch
          %161 = sbr.rel (%p159) target = $region32
        $region31: #{skipgram_forward.1} parent=27 // pred_region
          %s162 = smul.u32 %s26, 8
          %s163 = sld [smem:[#allocation8 + %s162]]
          %s164 = scalar_lea.vmem %s1, %s163
          %p166 = scmp.lt.u32.totalorder 1, 8
          %p167 = pneg %p166
          // Predicated region
          $region33: #{skipgram_forward.1} parent=31 // pred_check
            _
          $region34: #{skipgram_forward.1} parent=31 // pred_check_branch
            %169 = sbr.rel (%p166) target = $region36
          $region35: #{skipgram_forward.1} parent=31 // pred_region
            %s184 = sand.u32 1, 7
            %p185 = scmp.eq.s32.totalorder %s184, 0
            %p186 = pneg %p185
            // Predicated region
            $region48: #{skipgram_forward.1} parent=35 // pred_check
              _
            $region49: #{skipgram_forward.1} parent=35 // pred_check_branch
              %188 = sbr.rel (%p185) target = $region51
            $region50: #{skipgram_forward.1} parent=35 // pred_region
              %s189 = sand.u32 1, 7
              %s190 = ssub.s32 1, %s189
              %s191 = scalar_lea.vmem %s164, %s190
              %s192 = ssub.s32 1, %s189
              %s193 = scalar_lea.vmem [#allocation2], %s192
              %s194 = sshllo.u32 0, %s189
              loop: start=0, step=1, limit=1
              $region52: #{skipgram_forward.1} parent=50 // loop_pre_header
                _
              $region53: #{skipgram_forward.1} parent=50 // loop_header
                %s196 = sphi 0, %s200
                %p197 = scmp.ge.s32.totalorder %s196, 1
                %s201 = sphi %s191, %s191
                %s202 = sphi %s193, %s193
              $region54: #{skipgram_forward.1} parent=50 // loop_header_branch
                %199 = sbr.rel (%p197) target = $region58
              $region55: #{skipgram_forward.1} parent=50 // loop_body
                %v203 = vld [vmem:[%s201] sm:%s194]
                %204 = vst [vmem:[%s202] sm:%s194] %v203
              $region56: #{skipgram_forward.1} parent=50 // loop_footer
                %s200 = sadd.s32 1, %s196
              $region57: #{skipgram_forward.1} parent=50 // loop_footer_branch
                %195 = sbr.rel target = $region53
              $region58: #{skipgram_forward.1} parent=50 // loop_exit
                _
            $region51: #{skipgram_forward.1} parent=35 // pred_fallthru
              _
          $region36: #{skipgram_forward.1} parent=31 // pred_fallthru
            _
          // Predicated region
          $region37: #{skipgram_forward.1} parent=31 // pred_check
            %p170 = pneg %p166
          $region38: #{skipgram_forward.1} parent=31 // pred_check_branch
            %172 = sbr.rel (%p170) target = $region40
          $region39: #{skipgram_forward.1} parent=31 // pred_region
            %s173 = sshllo.u32 0, 1
            loop: start=0, step=1, limit=1
            $region41: #{skipgram_forward.1} parent=39 // loop_pre_header
              _
            $region42: #{skipgram_forward.1} parent=39 // loop_header
              %s175 = sphi 0, %s179
              %p176 = scmp.ge.s32.totalorder %s175, 1
              %s180 = sphi %s164, %s164
              %s181 = sphi [#allocation2], [#allocation2]
            $region43: #{skipgram_forward.1} parent=39 // loop_header_branch
              %178 = sbr.rel (%p176) target = $region47
            $region44: #{skipgram_forward.1} parent=39 // loop_body
              %v182 = vld [vmem:[%s180] sm:%s173]
              %183 = vst [vmem:[%s181] sm:%s173] %v182
            $region45: #{skipgram_forward.1} parent=39 // loop_footer
              %s179 = sadd.s32 1, %s175
            $region46: #{skipgram_forward.1} parent=39 // loop_footer_branch
              %174 = sbr.rel target = $region42
            $region47: #{skipgram_forward.1} parent=39 // loop_exit
              _
          $region40: #{skipgram_forward.1} parent=31 // pred_fallthru
            _
          // Predicated region
          $region59: #{skipgram_forward.1} parent=31 // pred_check
            _
          $region60: #{skipgram_forward.1} parent=31 // pred_check_branch
            %207 = sbr.rel (0) target = $region62
          $region61: #{skipgram_forward.1} parent=31 // pred_region
            %208 = vsyncadd [#allocation6], 16
          $region62: #{skipgram_forward.1} parent=31 // pred_fallthru
            _
          %s209 = sadd.s32 %s162, 1
          %s210 = sld [smem:[#allocation8 + %s209]]
          %s211 = scalar_lea.vmem %s1, %s210
          %s212 = scalar_lea.vmem [#allocation2], 1
          %p214 = scmp.lt.u32.totalorder 1, 8
          %p215 = pneg %p214
          // Predicated region
          $region63: #{skipgram_forward.1} parent=31 // pred_check
            _
          $region64: #{skipgram_forward.1} parent=31 // pred_check_branch
            %217 = sbr.rel (%p214) target = $region66
          $region65: #{skipgram_forward.1} parent=31 // pred_region
            %s232 = sand.u32 1, 7
            %p233 = scmp.eq.s32.totalorder %s232, 0
            %p234 = pneg %p233
            // Predicated region
            $region78: #{skipgram_forward.1} parent=65 // pred_check
              _
            $region79: #{skipgram_forward.1} parent=65 // pred_check_branch
              %236 = sbr.rel (%p233) target = $region81
            $region80: #{skipgram_forward.1} parent=65 // pred_region
              %s237 = sand.u32 1, 7
              %s238 = ssub.s32 1, %s237
              %s239 = scalar_lea.vmem %s211, %s238
              %s240 = ssub.s32 1, %s237
              %s241 = scalar_lea.vmem %s212, %s240 [#allocation2]
              %s242 = sshllo.u32 0, %s237
              loop: start=0, step=1, limit=1
              $region82: #{skipgram_forward.1} parent=80 // loop_pre_header
                _
              $region83: #{skipgram_forward.1} parent=80 // loop_header
                %s244 = sphi 0, %s248
                %p245 = scmp.ge.s32.totalorder %s244, 1
                %s249 = sphi %s239, %s239
                %s250 = sphi %s241, %s241
              $region84: #{skipgram_forward.1} parent=80 // loop_header_branch
                %247 = sbr.rel (%p245) target = $region88
              $region85: #{skipgram_forward.1} parent=80 // loop_body
                %v251 = vld [vmem:[%s249] sm:%s242]
                %252 = vst [vmem:[%s250] sm:%s242] %v251
              $region86: #{skipgram_forward.1} parent=80 // loop_footer
                %s248 = sadd.s32 1, %s244
              $region87: #{skipgram_forward.1} parent=80 // loop_footer_branch
                %243 = sbr.rel target = $region83
              $region88: #{skipgram_forward.1} parent=80 // loop_exit
                _
            $region81: #{skipgram_forward.1} parent=65 // pred_fallthru
              _
          $region66: #{skipgram_forward.1} parent=31 // pred_fallthru
            _
          // Predicated region
          $region67: #{skipgram_forward.1} parent=31 // pred_check
            %p218 = pneg %p214
          $region68: #{skipgram_forward.1} parent=31 // pred_check_branch
            %220 = sbr.rel (%p218) target = $region70
          $region69: #{skipgram_forward.1} parent=31 // pred_region
            %s221 = sshllo.u32 0, 1
            loop: start=0, step=1, limit=1
            $region71: #{skipgram_forward.1} parent=69 // loop_pre_header
              _
            $region72: #{skipgram_forward.1} parent=69 // loop_header
              %s223 = sphi 0, %s227
              %p224 = scmp.ge.s32.totalorder %s223, 1
              %s228 = sphi %s211, %s211
              %s229 = sphi %s212, %s212
            $region73: #{skipgram_forward.1} parent=69 // loop_header_branch
              %226 = sbr.rel (%p224) target = $region77
            $region74: #{skipgram_forward.1} parent=69 // loop_body
              %v230 = vld [vmem:[%s228] sm:%s221]
              %231 = vst [vmem:[%s229] sm:%s221] %v230
            $region75: #{skipgram_forward.1} parent=69 // loop_footer
              %s227 = sadd.s32 1, %s223
            $region76: #{skipgram_forward.1} parent=69 // loop_footer_branch
              %222 = sbr.rel target = $region72
            $region77: #{skipgram_forward.1} parent=69 // loop_exit
              _
          $region70: #{skipgram_forward.1} parent=31 // pred_fallthru
            _
          // Predicated region
          $region89: #{skipgram_forward.1} parent=31 // pred_check
            _
          $region90: #{skipgram_forward.1} parent=31 // pred_check_branch
            %255 = sbr.rel (0) target = $region92
          $region91: #{skipgram_forward.1} parent=31 // pred_region
            %256 = vsyncadd [#allocation6], 16
          $region92: #{skipgram_forward.1} parent=31 // pred_fallthru
            _
          %s257 = sadd.s32 %s162, 2
          %s258 = sld [smem:[#allocation8 + %s257]]
          %s259 = scalar_lea.vmem %s1, %s258
          %s260 = scalar_lea.vmem [#allocation2], 2
          %p262 = scmp.lt.u32.totalorder 1, 8
          %p263 = pneg %p262
          // Predicated region
          $region93: #{skipgram_forward.1} parent=31 // pred_check
            _
          $region94: #{skipgram_forward.1} parent=31 // pred_check_branch
            %265 = sbr.rel (%p262) target = $region96
          $region95: #{skipgram_forward.1} parent=31 // pred_region
            %s280 = sand.u32 1, 7
            %p281 = scmp.eq.s32.totalorder %s280, 0
            %p282 = pneg %p281
            // Predicated region
            $region108: #{skipgram_forward.1} parent=95 // pred_check
              _
            $region109: #{skipgram_forward.1} parent=95 // pred_check_branch
              %284 = sbr.rel (%p281) target = $region111
            $region110: #{skipgram_forward.1} parent=95 // pred_region
              %s285 = sand.u32 1, 7
              %s286 = ssub.s32 1, %s285
              %s287 = scalar_lea.vmem %s259, %s286
              %s288 = ssub.s32 1, %s285
              %s289 = scalar_lea.vmem %s260, %s288 [#allocation2]
              %s290 = sshllo.u32 0, %s285
              loop: start=0, step=1, limit=1
              $region112: #{skipgram_forward.1} parent=110 // loop_pre_header
                _
              $region113: #{skipgram_forward.1} parent=110 // loop_header
                %s292 = sphi 0, %s296
                %p293 = scmp.ge.s32.totalorder %s292, 1
                %s297 = sphi %s287, %s287
                %s298 = sphi %s289, %s289
              $region114: #{skipgram_forward.1} parent=110 // loop_header_branch
                %295 = sbr.rel (%p293) target = $region118
              $region115: #{skipgram_forward.1} parent=110 // loop_body
                %v299 = vld [vmem:[%s297] sm:%s290]
                %300 = vst [vmem:[%s298] sm:%s290] %v299
              $region116: #{skipgram_forward.1} parent=110 // loop_footer
                %s296 = sadd.s32 1, %s292
              $region117: #{skipgram_forward.1} parent=110 // loop_footer_branch
                %291 = sbr.rel target = $region113
              $region118: #{skipgram_forward.1} parent=110 // loop_exit
                _
            $region111: #{skipgram_forward.1} parent=95 // pred_fallthru
              _
          $region96: #{skipgram_forward.1} parent=31 // pred_fallthru
            _
          // Predicated region
          $region97: #{skipgram_forward.1} parent=31 // pred_check
            %p266 = pneg %p262
          $region98: #{skipgram_forward.1} parent=31 // pred_check_branch
            %268 = sbr.rel (%p266) target = $region100
          $region99: #{skipgram_forward.1} parent=31 // pred_region
            %s269 = sshllo.u32 0, 1
            loop: start=0, step=1, limit=1
            $region101: #{skipgram_forward.1} parent=99 // loop_pre_header
              _
            $region102: #{skipgram_forward.1} parent=99 // loop_header
              %s271 = sphi 0, %s275
              %p272 = scmp.ge.s32.totalorder %s271, 1
              %s276 = sphi %s259, %s259
              %s277 = sphi %s260, %s260
            $region103: #{skipgram_forward.1} parent=99 // loop_header_branch
              %274 = sbr.rel (%p272) target = $region107
            $region104: #{skipgram_forward.1} parent=99 // loop_body
              %v278 = vld [vmem:[%s276] sm:%s269]
              %279 = vst [vmem:[%s277] sm:%s269] %v278
            $region105: #{skipgram_forward.1} parent=99 // loop_footer
              %s275 = sadd.s32 1, %s271
            $region106: #{skipgram_forward.1} parent=99 // loop_footer_branch
              %270 = sbr.rel target = $region102
            $region107: #{skipgram_forward.1} parent=99 // loop_exit
              _
          $region100: #{skipgram_forward.1} parent=31 // pred_fallthru
            _
          // Predicated region
          $region119: #{skipgram_forward.1} parent=31 // pred_check
            _
          $region120: #{skipgram_forward.1} parent=31 // pred_check_branch
            %303 = sbr.rel (0) target = $region122
          $region121: #{skipgram_forward.1} parent=31 // pred_region
            %304 = vsyncadd [#allocation6], 16
          $region122: #{skipgram_forward.1} parent=31 // pred_fallthru
            _
          %s305 = sadd.s32 %s162, 3
          %s306 = sld [smem:[#allocation8 + %s305]]
          %s307 = scalar_lea.vmem %s1, %s306
          %s308 = scalar_lea.vmem [#allocation2], 3
          %p310 = scmp.lt.u32.totalorder 1, 8
          %p311 = pneg %p310
          // Predicated region
          $region123: #{skipgram_forward.1} parent=31 // pred_check
            _
          $region124: #{skipgram_forward.1} parent=31 // pred_check_branch
            %313 = sbr.rel (%p310) target = $region126
          $region125: #{skipgram_forward.1} parent=31 // pred_region
            %s328 = sand.u32 1, 7
            %p329 = scmp.eq.s32.totalorder %s328, 0
            %p330 = pneg %p329
            // Predicated region
            $region138: #{skipgram_forward.1} parent=125 // pred_check
              _
            $region139: #{skipgram_forward.1} parent=125 // pred_check_branch
              %332 = sbr.rel (%p329) target = $region141
            $region140: #{skipgram_forward.1} parent=125 // pred_region
              %s333 = sand.u32 1, 7
              %s334 = ssub.s32 1, %s333
              %s335 = scalar_lea.vmem %s307, %s334
              %s336 = ssub.s32 1, %s333
              %s337 = scalar_lea.vmem %s308, %s336 [#allocation2]
              %s338 = sshllo.u32 0, %s333
              loop: start=0, step=1, limit=1
              $region142: #{skipgram_forward.1} parent=140 // loop_pre_header
                _
              $region143: #{skipgram_forward.1} parent=140 // loop_header
                %s340 = sphi 0, %s344
                %p341 = scmp.ge.s32.totalorder %s340, 1
                %s345 = sphi %s335, %s335
                %s346 = sphi %s337, %s337
              $region144: #{skipgram_forward.1} parent=140 // loop_header_branch
                %343 = sbr.rel (%p341) target = $region148
              $region145: #{skipgram_forward.1} parent=140 // loop_body
                %v347 = vld [vmem:[%s345] sm:%s338]
                %348 = vst [vmem:[%s346] sm:%s338] %v347
              $region146: #{skipgram_forward.1} parent=140 // loop_footer
                %s344 = sadd.s32 1, %s340
              $region147: #{skipgram_forward.1} parent=140 // loop_footer_branch
                %339 = sbr.rel target = $region143
              $region148: #{skipgram_forward.1} parent=140 // loop_exit
                _
            $region141: #{skipgram_forward.1} parent=125 // pred_fallthru
              _
          $region126: #{skipgram_forward.1} parent=31 // pred_fallthru
            _
          // Predicated region
          $region127: #{skipgram_forward.1} parent=31 // pred_check
            %p314 = pneg %p310
          $region128: #{skipgram_forward.1} parent=31 // pred_check_branch
            %316 = sbr.rel (%p314) target = $region130
          $region129: #{skipgram_forward.1} parent=31 // pred_region
            %s317 = sshllo.u32 0, 1
            loop: start=0, step=1, limit=1
            $region131: #{skipgram_forward.1} parent=129 // loop_pre_header
              _
            $region132: #{skipgram_forward.1} parent=129 // loop_header
              %s319 = sphi 0, %s323
              %p320 = scmp.ge.s32.totalorder %s319, 1
              %s324 = sphi %s307, %s307
              %s325 = sphi %s308, %s308
            $region133: #{skipgram_forward.1} parent=129 // loop_header_branch
              %322 = sbr.rel (%p320) target = $region137
            $region134: #{skipgram_forward.1} parent=129 // loop_body
              %v326 = vld [vmem:[%s324] sm:%s317]
              %327 = vst [vmem:[%s325] sm:%s317] %v326
            $region135: #{skipgram_forward.1} parent=129 // loop_footer
              %s323 = sadd.s32 1, %s319
            $region136: #{skipgram_forward.1} parent=129 // loop_footer_branch
              %318 = sbr.rel target = $region132
            $region137: #{skipgram_forward.1} parent=129 // loop_exit
              _
          $region130: #{skipgram_forward.1} parent=31 // pred_fallthru
            _
          // Predicated region
          $region149: #{skipgram_forward.1} parent=31 // pred_check
            _
          $region150: #{skipgram_forward.1} parent=31 // pred_check_branch
            %351 = sbr.rel (0) target = $region152
          $region151: #{skipgram_forward.1} parent=31 // pred_region
            %352 = vsyncadd [#allocation6], 16
          $region152: #{skipgram_forward.1} parent=31 // pred_fallthru
            _
          %s353 = sadd.s32 %s162, 4
          %s354 = sld [smem:[#allocation8 + %s353]]
          %s355 = scalar_lea.vmem %s1, %s354
          %s356 = scalar_lea.vmem [#allocation2], 4
          %p358 = scmp.lt.u32.totalorder 1, 8
          %p359 = pneg %p358
          // Predicated region
          $region153: #{skipgram_forward.1} parent=31 // pred_check
            _
          $region154: #{skipgram_forward.1} parent=31 // pred_check_branch
            %361 = sbr.rel (%p358) target = $region156
          $region155: #{skipgram_forward.1} parent=31 // pred_region
            %s376 = sand.u32 1, 7
            %p377 = scmp.eq.s32.totalorder %s376, 0
            %p378 = pneg %p377
            // Predicated region
            $region168: #{skipgram_forward.1} parent=155 // pred_check
              _
            $region169: #{skipgram_forward.1} parent=155 // pred_check_branch
              %380 = sbr.rel (%p377) target = $region171
            $region170: #{skipgram_forward.1} parent=155 // pred_region
              %s381 = sand.u32 1, 7
              %s382 = ssub.s32 1, %s381
              %s383 = scalar_lea.vmem %s355, %s382
              %s384 = ssub.s32 1, %s381
              %s385 = scalar_lea.vmem %s356, %s384 [#allocation2]
              %s386 = sshllo.u32 0, %s381
              loop: start=0, step=1, limit=1
              $region172: #{skipgram_forward.1} parent=170 // loop_pre_header
                _
              $region173: #{skipgram_forward.1} parent=170 // loop_header
                %s388 = sphi 0, %s392
                %p389 = scmp.ge.s32.totalorder %s388, 1
                %s393 = sphi %s383, %s383
                %s394 = sphi %s385, %s385
              $region174: #{skipgram_forward.1} parent=170 // loop_header_branch
                %391 = sbr.rel (%p389) target = $region178
              $region175: #{skipgram_forward.1} parent=170 // loop_body
                %v395 = vld [vmem:[%s393] sm:%s386]
                %396 = vst [vmem:[%s394] sm:%s386] %v395
              $region176: #{skipgram_forward.1} parent=170 // loop_footer
                %s392 = sadd.s32 1, %s388
              $region177: #{skipgram_forward.1} parent=170 // loop_footer_branch
                %387 = sbr.rel target = $region173
              $region178: #{skipgram_forward.1} parent=170 // loop_exit
                _
            $region171: #{skipgram_forward.1} parent=155 // pred_fallthru
              _
          $region156: #{skipgram_forward.1} parent=31 // pred_fallthru
            _
          // Predicated region
          $region157: #{skipgram_forward.1} parent=31 // pred_check
            %p362 = pneg %p358
          $region158: #{skipgram_forward.1} parent=31 // pred_check_branch
            %364 = sbr.rel (%p362) target = $region160
          $region159: #{skipgram_forward.1} parent=31 // pred_region
            %s365 = sshllo.u32 0, 1
            loop: start=0, step=1, limit=1
            $region161: #{skipgram_forward.1} parent=159 // loop_pre_header
              _
            $region162: #{skipgram_forward.1} parent=159 // loop_header
              %s367 = sphi 0, %s371
              %p368 = scmp.ge.s32.totalorder %s367, 1
              %s372 = sphi %s355, %s355
              %s373 = sphi %s356, %s356
            $region163: #{skipgram_forward.1} parent=159 // loop_header_branch
              %370 = sbr.rel (%p368) target = $region167
            $region164: #{skipgram_forward.1} parent=159 // loop_body
              %v374 = vld [vmem:[%s372] sm:%s365]
              %375 = vst [vmem:[%s373] sm:%s365] %v374
            $region165: #{skipgram_forward.1} parent=159 // loop_footer
              %s371 = sadd.s32 1, %s367
            $region166: #{skipgram_forward.1} parent=159 // loop_footer_branch
              %366 = sbr.rel target = $region162
            $region167: #{skipgram_forward.1} parent=159 // loop_exit
              _
          $region160: #{skipgram_forward.1} parent=31 // pred_fallthru
            _
          // Predicated region
          $region179: #{skipgram_forward.1} parent=31 // pred_check
            _
          $region180: #{skipgram_forward.1} parent=31 // pred_check_branch
            %399 = sbr.rel (0) target = $region182
          $region181: #{skipgram_forward.1} parent=31 // pred_region
            %400 = vsyncadd [#allocation6], 16
          $region182: #{skipgram_forward.1} parent=31 // pred_fallthru
            _
          %s401 = sadd.s32 %s162, 5
          %s402 = sld [smem:[#allocation8 + %s401]]
          %s403 = scalar_lea.vmem %s1, %s402
          %s404 = scalar_lea.vmem [#allocation2], 5
          %p406 = scmp.lt.u32.totalorder 1, 8
          %p407 = pneg %p406
          // Predicated region
          $region183: #{skipgram_forward.1} parent=31 // pred_check
            _
          $region184: #{skipgram_forward.1} parent=31 // pred_check_branch
            %409 = sbr.rel (%p406) target = $region186
          $region185: #{skipgram_forward.1} parent=31 // pred_region
            %s424 = sand.u32 1, 7
            %p425 = scmp.eq.s32.totalorder %s424, 0
            %p426 = pneg %p425
            // Predicated region
            $region198: #{skipgram_forward.1} parent=185 // pred_check
              _
            $region199: #{skipgram_forward.1} parent=185 // pred_check_branch
              %428 = sbr.rel (%p425) target = $region201
            $region200: #{skipgram_forward.1} parent=185 // pred_region
              %s429 = sand.u32 1, 7
              %s430 = ssub.s32 1, %s429
              %s431 = scalar_lea.vmem %s403, %s430
              %s432 = ssub.s32 1, %s429
              %s433 = scalar_lea.vmem %s404, %s432 [#allocation2]
              %s434 = sshllo.u32 0, %s429
              loop: start=0, step=1, limit=1
              $region202: #{skipgram_forward.1} parent=200 // loop_pre_header
                _
              $region203: #{skipgram_forward.1} parent=200 // loop_header
                %s436 = sphi 0, %s440
                %p437 = scmp.ge.s32.totalorder %s436, 1
                %s441 = sphi %s431, %s431
                %s442 = sphi %s433, %s433
              $region204: #{skipgram_forward.1} parent=200 // loop_header_branch
                %439 = sbr.rel (%p437) target = $region208
              $region205: #{skipgram_forward.1} parent=200 // loop_body
                %v443 = vld [vmem:[%s441] sm:%s434]
                %444 = vst [vmem:[%s442] sm:%s434] %v443
              $region206: #{skipgram_forward.1} parent=200 // loop_footer
                %s440 = sadd.s32 1, %s436
              $region207: #{skipgram_forward.1} parent=200 // loop_footer_branch
                %435 = sbr.rel target = $region203
              $region208: #{skipgram_forward.1} parent=200 // loop_exit
                _
            $region201: #{skipgram_forward.1} parent=185 // pred_fallthru
              _
          $region186: #{skipgram_forward.1} parent=31 // pred_fallthru
            _
          // Predicated region
          $region187: #{skipgram_forward.1} parent=31 // pred_check
            %p410 = pneg %p406
          $region188: #{skipgram_forward.1} parent=31 // pred_check_branch
            %412 = sbr.rel (%p410) target = $region190
          $region189: #{skipgram_forward.1} parent=31 // pred_region
            %s413 = sshllo.u32 0, 1
            loop: start=0, step=1, limit=1
            $region191: #{skipgram_forward.1} parent=189 // loop_pre_header
              _
            $region192: #{skipgram_forward.1} parent=189 // loop_header
              %s415 = sphi 0, %s419
              %p416 = scmp.ge.s32.totalorder %s415, 1
              %s420 = sphi %s403, %s403
              %s421 = sphi %s404, %s404
            $region193: #{skipgram_forward.1} parent=189 // loop_header_branch
              %418 = sbr.rel (%p416) target = $region197
            $region194: #{skipgram_forward.1} parent=189 // loop_body
              %v422 = vld [vmem:[%s420] sm:%s413]
              %423 = vst [vmem:[%s421] sm:%s413] %v422
            $region195: #{skipgram_forward.1} parent=189 // loop_footer
              %s419 = sadd.s32 1, %s415
            $region196: #{skipgram_forward.1} parent=189 // loop_footer_branch
              %414 = sbr.rel target = $region192
            $region197: #{skipgram_forward.1} parent=189 // loop_exit
              _
          $region190: #{skipgram_forward.1} parent=31 // pred_fallthru
            _
          // Predicated region
          $region209: #{skipgram_forward.1} parent=31 // pred_check
            _
          $region210: #{skipgram_forward.1} parent=31 // pred_check_branch
            %447 = sbr.rel (0) target = $region212
          $region211: #{skipgram_forward.1} parent=31 // pred_region
            %448 = vsyncadd [#allocation6], 16
          $region212: #{skipgram_forward.1} parent=31 // pred_fallthru
            _
          %s449 = sadd.s32 %s162, 6
          %s450 = sld [smem:[#allocation8 + %s449]]
          %s451 = scalar_lea.vmem %s1, %s450
          %s452 = scalar_lea.vmem [#allocation2], 6
          %p454 = scmp.lt.u32.totalorder 1, 8
          %p455 = pneg %p454
          // Predicated region
          $region213: #{skipgram_forward.1} parent=31 // pred_check
            _
          $region214: #{skipgram_forward.1} parent=31 // pred_check_branch
            %457 = sbr.rel (%p454) target = $region216
          $region215: #{skipgram_forward.1} parent=31 // pred_region
            %s472 = sand.u32 1, 7
            %p473 = scmp.eq.s32.totalorder %s472, 0
            %p474 = pneg %p473
            // Predicated region
            $region228: #{skipgram_forward.1} parent=215 // pred_check
              _
            $region229: #{skipgram_forward.1} parent=215 // pred_check_branch
              %476 = sbr.rel (%p473) target = $region231
            $region230: #{skipgram_forward.1} parent=215 // pred_region
              %s477 = sand.u32 1, 7
              %s478 = ssub.s32 1, %s477
              %s479 = scalar_lea.vmem %s451, %s478
              %s480 = ssub.s32 1, %s477
              %s481 = scalar_lea.vmem %s452, %s480 [#allocation2]
              %s482 = sshllo.u32 0, %s477
              loop: start=0, step=1, limit=1
              $region232: #{skipgram_forward.1} parent=230 // loop_pre_header
                _
              $region233: #{skipgram_forward.1} parent=230 // loop_header
                %s484 = sphi 0, %s488
                %p485 = scmp.ge.s32.totalorder %s484, 1
                %s489 = sphi %s479, %s479
                %s490 = sphi %s481, %s481
              $region234: #{skipgram_forward.1} parent=230 // loop_header_branch
                %487 = sbr.rel (%p485) target = $region238
              $region235: #{skipgram_forward.1} parent=230 // loop_body
                %v491 = vld [vmem:[%s489] sm:%s482]
                %492 = vst [vmem:[%s490] sm:%s482] %v491
              $region236: #{skipgram_forward.1} parent=230 // loop_footer
                %s488 = sadd.s32 1, %s484
              $region237: #{skipgram_forward.1} parent=230 // loop_footer_branch
                %483 = sbr.rel target = $region233
              $region238: #{skipgram_forward.1} parent=230 // loop_exit
                _
            $region231: #{skipgram_forward.1} parent=215 // pred_fallthru
              _
          $region216: #{skipgram_forward.1} parent=31 // pred_fallthru
            _
          // Predicated region
          $region217: #{skipgram_forward.1} parent=31 // pred_check
            %p458 = pneg %p454
          $region218: #{skipgram_forward.1} parent=31 // pred_check_branch
            %460 = sbr.rel (%p458) target = $region220
          $region219: #{skipgram_forward.1} parent=31 // pred_region
            %s461 = sshllo.u32 0, 1
            loop: start=0, step=1, limit=1
            $region221: #{skipgram_forward.1} parent=219 // loop_pre_header
              _
            $region222: #{skipgram_forward.1} parent=219 // loop_header
              %s463 = sphi 0, %s467
              %p464 = scmp.ge.s32.totalorder %s463, 1
              %s468 = sphi %s451, %s451
              %s469 = sphi %s452, %s452
            $region223: #{skipgram_forward.1} parent=219 // loop_header_branch
              %466 = sbr.rel (%p464) target = $region227
            $region224: #{skipgram_forward.1} parent=219 // loop_body
              %v470 = vld [vmem:[%s468] sm:%s461]
              %471 = vst [vmem:[%s469] sm:%s461] %v470
            $region225: #{skipgram_forward.1} parent=219 // loop_footer
              %s467 = sadd.s32 1, %s463
            $region226: #{skipgram_forward.1} parent=219 // loop_footer_branch
              %462 = sbr.rel target = $region222
            $region227: #{skipgram_forward.1} parent=219 // loop_exit
              _
          $region220: #{skipgram_forward.1} parent=31 // pred_fallthru
            _
          // Predicated region
          $region239: #{skipgram_forward.1} parent=31 // pred_check
            _
          $region240: #{skipgram_forward.1} parent=31 // pred_check_branch
            %495 = sbr.rel (0) target = $region242
          $region241: #{skipgram_forward.1} parent=31 // pred_region
            %496 = vsyncadd [#allocation6], 16
          $region242: #{skipgram_forward.1} parent=31 // pred_fallthru
            _
          %s497 = sadd.s32 %s162, 7
          %s498 = sld [smem:[#allocation8 + %s497]]
          %s499 = scalar_lea.vmem %s1, %s498
          %s500 = scalar_lea.vmem [#allocation2], 7
          %p502 = scmp.lt.u32.totalorder 1, 8
          %p503 = pneg %p502
          // Predicated region
          $region243: #{skipgram_forward.1} parent=31 // pred_check
            _
          $region244: #{skipgram_forward.1} parent=31 // pred_check_branch
            %505 = sbr.rel (%p502) target = $region246
          $region245: #{skipgram_forward.1} parent=31 // pred_region
            %s520 = sand.u32 1, 7
            %p521 = scmp.eq.s32.totalorder %s520, 0
            %p522 = pneg %p521
            // Predicated region
            $region258: #{skipgram_forward.1} parent=245 // pred_check
              _
            $region259: #{skipgram_forward.1} parent=245 // pred_check_branch
              %524 = sbr.rel (%p521) target = $region261
            $region260: #{skipgram_forward.1} parent=245 // pred_region
              %s525 = sand.u32 1, 7
              %s526 = ssub.s32 1, %s525
              %s527 = scalar_lea.vmem %s499, %s526
              %s528 = ssub.s32 1, %s525
              %s529 = scalar_lea.vmem %s500, %s528 [#allocation2]
              %s530 = sshllo.u32 0, %s525
              loop: start=0, step=1, limit=1
              $region262: #{skipgram_forward.1} parent=260 // loop_pre_header
                _
              $region263: #{skipgram_forward.1} parent=260 // loop_header
                %s532 = sphi 0, %s536
                %p533 = scmp.ge.s32.totalorder %s532, 1
                %s537 = sphi %s527, %s527
                %s538 = sphi %s529, %s529
              $region264: #{skipgram_forward.1} parent=260 // loop_header_branch
                %535 = sbr.rel (%p533) target = $region268
              $region265: #{skipgram_forward.1} parent=260 // loop_body
                %v539 = vld [vmem:[%s537] sm:%s530]
                %540 = vst [vmem:[%s538] sm:%s530] %v539
              $region266: #{skipgram_forward.1} parent=260 // loop_footer
                %s536 = sadd.s32 1, %s532
              $region267: #{skipgram_forward.1} parent=260 // loop_footer_branch
                %531 = sbr.rel target = $region263
              $region268: #{skipgram_forward.1} parent=260 // loop_exit
                _
            $region261: #{skipgram_forward.1} parent=245 // pred_fallthru
              _
          $region246: #{skipgram_forward.1} parent=31 // pred_fallthru
            _
          // Predicated region
          $region247: #{skipgram_forward.1} parent=31 // pred_check
            %p506 = pneg %p502
          $region248: #{skipgram_forward.1} parent=31 // pred_check_branch
            %508 = sbr.rel (%p506) target = $region250
          $region249: #{skipgram_forward.1} parent=31 // pred_region
            %s509 = sshllo.u32 0, 1
            loop: start=0, step=1, limit=1
            $region251: #{skipgram_forward.1} parent=249 // loop_pre_header
              _
            $region252: #{skipgram_forward.1} parent=249 // loop_header
              %s511 = sphi 0, %s515
              %p512 = scmp.ge.s32.totalorder %s511, 1
              %s516 = sphi %s499, %s499
              %s517 = sphi %s500, %s500
            $region253: #{skipgram_forward.1} parent=249 // loop_header_branch
              %514 = sbr.rel (%p512) target = $region257
            $region254: #{skipgram_forward.1} parent=249 // loop_body
              %v518 = vld [vmem:[%s516] sm:%s509]
              %519 = vst [vmem:[%s517] sm:%s509] %v518
            $region255: #{skipgram_forward.1} parent=249 // loop_footer
              %s515 = sadd.s32 1, %s511
            $region256: #{skipgram_forward.1} parent=249 // loop_footer_branch
              %510 = sbr.rel target = $region252
            $region257: #{skipgram_forward.1} parent=249 // loop_exit
              _
          $region250: #{skipgram_forward.1} parent=31 // pred_fallthru
            _
          // Predicated region
          $region269: #{skipgram_forward.1} parent=31 // pred_check
            _
          $region270: #{skipgram_forward.1} parent=31 // pred_check_branch
            %543 = sbr.rel (0) target = $region272
          $region271: #{skipgram_forward.1} parent=31 // pred_region
            %544 = vsyncadd [#allocation6], 16
          $region272: #{skipgram_forward.1} parent=31 // pred_fallthru
            _
          %s545 = smul.u32 1, 1
          %s546 = sshll.u32 %s545, 4
          %547 = dma.done [#allocation6], %s546
          %s548 = sshll.u32 %s545, 4
          %549 = dma.done [#allocation6], %s548
          %s550 = sshll.u32 %s545, 4
          %551 = dma.done [#allocation6], %s550
          %s552 = sshll.u32 %s545, 4
          %553 = dma.done [#allocation6], %s552
          %s554 = sshll.u32 %s545, 4
          %555 = dma.done [#allocation6], %s554
          %s556 = sshll.u32 %s545, 4
          %557 = dma.done [#allocation6], %s556
          %s558 = sshll.u32 %s545, 4
          %559 = dma.done [#allocation6], %s558
          %s560 = sshll.u32 %s545, 4
          %561 = dma.done [#allocation6], %s560
          %v562 = vld [vmem:[#allocation2] sm:$0xff]
          %v563 = vpack.c.bf16 %v562, %v562
          %vm564 = vcmask 519168
          %565 = vst.msk [vmem:[#allocation3] sm:$0xf] %vm564, %v563
          %vm566 = vcmask 7168
          %567 = vst.msk [vmem:[#allocation4] sm:$0xff] %vm566, -1e+30
          %568 = vst.msk [vmem:[#allocation5] sm:$0xff] %vm566, 0.0
        $region32: #{skipgram_forward.1} parent=27 // pred_fallthru
          _
        %s569 = smul.u32 %s27, 512
        %v570 = vld [vmem:[#allocation3] sm:$0xf]
        %v571 = vld [vmem:[%s155] sm:$0xf]
        %v572 = vld [vmem:[%s155 + $0x4] sm:$0xf]
        %v573 = vld [vmem:[%s155 + $0x8] sm:$0xf]
        %v574 = vld [vmem:[%s155 + $0xc] sm:$0xf]
        %v575 = vld [vmem:[%s155 + $0x10] sm:$0xf]
        %v576 = vld [vmem:[%s155 + $0x14] sm:$0xf]
        %v577 = vld [vmem:[%s155 + $0x18] sm:$0xf]
        %v578 = vld [vmem:[%s155 + $0x1c] sm:$0xf]
        %v579 = vld [vmem:[%s155 + $0x20] sm:$0xf]
        %v580 = vld [vmem:[%s155 + $0x24] sm:$0xf]
        %v581 = vld [vmem:[%s155 + $0x28] sm:$0xf]
        %v582 = vld [vmem:[%s155 + $0x2c] sm:$0xf]
        %v583 = vld [vmem:[%s155 + $0x30] sm:$0xf]
        %v584 = vld [vmem:[%s155 + $0x34] sm:$0xf]
        %v585 = vld [vmem:[%s155 + $0x38] sm:$0xf]
        %v586 = vld [vmem:[%s155 + $0x3c] sm:$0xf]
        %v587 = vld [vmem:[%s155 + $0x40] sm:$0xf]
        %v588 = vld [vmem:[%s155 + $0x44] sm:$0xf]
        %v589 = vld [vmem:[%s155 + $0x48] sm:$0xf]
        %v590 = vld [vmem:[%s155 + $0x4c] sm:$0xf]
        %v591 = vld [vmem:[%s155 + $0x50] sm:$0xf]
        %v592 = vld [vmem:[%s155 + $0x54] sm:$0xf]
        %v593 = vld [vmem:[%s155 + $0x58] sm:$0xf]
        %v594 = vld [vmem:[%s155 + $0x5c] sm:$0xf]
        %v595 = vld [vmem:[%s155 + $0x60] sm:$0xf]
        %v596 = vld [vmem:[%s155 + $0x64] sm:$0xf]
        %v597 = vld [vmem:[%s155 + $0x68] sm:$0xf]
        %v598 = vld [vmem:[%s155 + $0x6c] sm:$0xf]
        %v599 = vld [vmem:[%s155 + $0x70] sm:$0xf]
        %v600 = vld [vmem:[%s155 + $0x74] sm:$0xf]
        %v601 = vld [vmem:[%s155 + $0x78] sm:$0xf]
        %v602 = vld [vmem:[%s155 + $0x7c] sm:$0xf]
        %v603 = vld [vmem:[%s155 + $0x80] sm:$0xf]
        %v604 = vld [vmem:[%s155 + $0x84] sm:$0xf]
        %v605 = vld [vmem:[%s155 + $0x88] sm:$0xf]
        %v606 = vld [vmem:[%s155 + $0x8c] sm:$0xf]
        %v607 = vld [vmem:[%s155 + $0x90] sm:$0xf]
        %v608 = vld [vmem:[%s155 + $0x94] sm:$0xf]
        %v609 = vld [vmem:[%s155 + $0x98] sm:$0xf]
        %v610 = vld [vmem:[%s155 + $0x9c] sm:$0xf]
        %v611 = vld [vmem:[%s155 + $0xa0] sm:$0xf]
        %v612 = vld [vmem:[%s155 + $0xa4] sm:$0xf]
        %v613 = vld [vmem:[%s155 + $0xa8] sm:$0xf]
        %v614 = vld [vmem:[%s155 + $0xac] sm:$0xf]
        %v615 = vld [vmem:[%s155 + $0xb0] sm:$0xf]
        %v616 = vld [vmem:[%s155 + $0xb4] sm:$0xf]
        %v617 = vld [vmem:[%s155 + $0xb8] sm:$0xf]
        %v618 = vld [vmem:[%s155 + $0xbc] sm:$0xf]
        %v619 = vld [vmem:[%s155 + $0xc0] sm:$0xf]
        %v620 = vld [vmem:[%s155 + $0xc4] sm:$0xf]
        %v621 = vld [vmem:[%s155 + $0xc8] sm:$0xf]
        %v622 = vld [vmem:[%s155 + $0xcc] sm:$0xf]
        %v623 = vld [vmem:[%s155 + $0xd0] sm:$0xf]
        %v624 = vld [vmem:[%s155 + $0xd4] sm:$0xf]
        %v625 = vld [vmem:[%s155 + $0xd8] sm:$0xf]
        %v626 = vld [vmem:[%s155 + $0xdc] sm:$0xf]
        %v627 = vld [vmem:[%s155 + $0xe0] sm:$0xf]
        %v628 = vld [vmem:[%s155 + $0xe4] sm:$0xf]
        %v629 = vld [vmem:[%s155 + $0xe8] sm:$0xf]
        %v630 = vld [vmem:[%s155 + $0xec] sm:$0xf]
        %v631 = vld [vmem:[%s155 + $0xf0] sm:$0xf]
        %v632 = vld [vmem:[%s155 + $0xf4] sm:$0xf]
        %v633 = vld [vmem:[%s155 + $0xf8] sm:$0xf]
        %v634 = vld [vmem:[%s155 + $0xfc] sm:$0xf]
        %s635 = sshra.s32 %s569, 7
        %s636 = sand.u32 %s569, 127
        %s637 = scalar_lea.vmem %s3, %s635
        %v638 = vld [vmem:[%s637] sm:$0xf]
        %v640 = vlaneseq
        %v641 = vshrl.u32 %v640, 7
        %v642 = vsub.s32 0, %v641
        %v643 = vrot.slane %v638, %v642
        %v644 = vlaneseq
        %v645 = vshrl.u32 %v644, 7
        %v646 = vsub.s32 1, %v645
        %v647 = vrot.slane %v638, %v646
        %v648 = vlaneseq
        %v649 = vshrl.u32 %v648, 7
        %v650 = vsub.s32 2, %v649
        %v651 = vrot.slane %v638, %v650
        %v652 = vlaneseq
        %v653 = vshrl.u32 %v652, 7
        %v654 = vsub.s32 3, %v653
        %v655 = vrot.slane %v638, %v654
        %v724 = vunpack.c.l.b16 %v571
        %v725 = vunpack.c.l.b16 %v572
        %v726 = vunpack.c.l.b16 %v573
        %v727 = vunpack.c.l.b16 %v574
        %v728 = vunpack.c.l.b16 %v575
        %v729 = vunpack.c.l.b16 %v576
        %v730 = vunpack.c.l.b16 %v577
        %v731 = vunpack.c.l.b16 %v578
        %v732 = vunpack.c.l.b16 %v579
        %v733 = vunpack.c.l.b16 %v580
        %v734 = vunpack.c.l.b16 %v581
        %v735 = vunpack.c.l.b16 %v582
        %v736 = vunpack.c.l.b16 %v583
        %v737 = vunpack.c.l.b16 %v584
        %v738 = vunpack.c.l.b16 %v585
        %v739 = vunpack.c.l.b16 %v586
        %v740 = vunpack.c.l.b16 %v587
        %v741 = vunpack.c.l.b16 %v588
        %v742 = vunpack.c.l.b16 %v589
        %v743 = vunpack.c.l.b16 %v590
        %v744 = vunpack.c.l.b16 %v591
        %v745 = vunpack.c.l.b16 %v592
        %v746 = vunpack.c.l.b16 %v593
        %v747 = vunpack.c.l.b16 %v594
        %v748 = vunpack.c.l.b16 %v595
        %v749 = vunpack.c.l.b16 %v596
        %v750 = vunpack.c.l.b16 %v597
        %v751 = vunpack.c.l.b16 %v598
        %v752 = vunpack.c.l.b16 %v599
        %v753 = vunpack.c.l.b16 %v600
        %v754 = vunpack.c.l.b16 %v601
        %v755 = vunpack.c.l.b16 %v602
        %v756 = vunpack.c.l.b16 %v603
        %v757 = vunpack.c.l.b16 %v604
        %v758 = vunpack.c.l.b16 %v605
        %v759 = vunpack.c.l.b16 %v606
        %v760 = vunpack.c.l.b16 %v607
        %v761 = vunpack.c.l.b16 %v608
        %v762 = vunpack.c.l.b16 %v609
        %v763 = vunpack.c.l.b16 %v610
        %v764 = vunpack.c.l.b16 %v611
        %v765 = vunpack.c.l.b16 %v612
        %v766 = vunpack.c.l.b16 %v613
        %v767 = vunpack.c.l.b16 %v614
        %v768 = vunpack.c.l.b16 %v615
        %v769 = vunpack.c.l.b16 %v616
        %v770 = vunpack.c.l.b16 %v617
        %v771 = vunpack.c.l.b16 %v618
        %v772 = vunpack.c.l.b16 %v619
        %v773 = vunpack.c.l.b16 %v620
        %v774 = vunpack.c.l.b16 %v621
        %v775 = vunpack.c.l.b16 %v622
        %v776 = vunpack.c.l.b16 %v623
        %v777 = vunpack.c.l.b16 %v624
        %v778 = vunpack.c.l.b16 %v625
        %v779 = vunpack.c.l.b16 %v626
        %v780 = vunpack.c.l.b16 %v627
        %v781 = vunpack.c.l.b16 %v628
        %v782 = vunpack.c.l.b16 %v629
        %v783 = vunpack.c.l.b16 %v630
        %v784 = vunpack.c.l.b16 %v631
        %v785 = vunpack.c.l.b16 %v632
        %v786 = vunpack.c.l.b16 %v633
        %v787 = vunpack.c.l.b16 %v634
        %v788 = vpack.c.b16 %v725, %v724
        %v789 = vpack.c.b16 %v727, %v726
        %v790 = vpack.c.b16 %v729, %v728
        %v791 = vpack.c.b16 %v731, %v730
        %v792 = vpack.c.b16 %v733, %v732
        %v793 = vpack.c.b16 %v735, %v734
        %v794 = vpack.c.b16 %v737, %v736
        %v795 = vpack.c.b16 %v739, %v738
        %v796 = vpack.c.b16 %v741, %v740
        %v797 = vpack.c.b16 %v743, %v742
        %v798 = vpack.c.b16 %v745, %v744
        %v799 = vpack.c.b16 %v747, %v746
        %v800 = vpack.c.b16 %v749, %v748
        %v801 = vpack.c.b16 %v751, %v750
        %v802 = vpack.c.b16 %v753, %v752
        %v803 = vpack.c.b16 %v755, %v754
        %v804 = vpack.c.b16 %v757, %v756
        %v805 = vpack.c.b16 %v759, %v758
        %v806 = vpack.c.b16 %v761, %v760
        %v807 = vpack.c.b16 %v763, %v762
        %v808 = vpack.c.b16 %v765, %v764
        %v809 = vpack.c.b16 %v767, %v766
        %v810 = vpack.c.b16 %v769, %v768
        %v811 = vpack.c.b16 %v771, %v770
        %v812 = vpack.c.b16 %v773, %v772
        %v813 = vpack.c.b16 %v775, %v774
        %v814 = vpack.c.b16 %v777, %v776
        %v815 = vpack.c.b16 %v779, %v778
        %v816 = vpack.c.b16 %v781, %v780
        %v817 = vpack.c.b16 %v783, %v782
        %v818 = vpack.c.b16 %v785, %v784
        %v819 = vpack.c.b16 %v787, %v786
        %vm820 = vcmask 523264
        %v822 = vsel %vm820, %v570, 0
        %v825 = vsel %vm820, %v788, 0
        %v828 = vsel %vm820, %v789, 0
        %v831 = vsel %vm820, %v790, 0
        %v834 = vsel %vm820, %v791, 0
        %v837 = vsel %vm820, %v792, 0
        %v840 = vsel %vm820, %v793, 0
        %v843 = vsel %vm820, %v794, 0
        %v846 = vsel %vm820, %v795, 0
        %v849 = vsel %vm820, %v796, 0
        %v852 = vsel %vm820, %v797, 0
        %v855 = vsel %vm820, %v798, 0
        %v858 = vsel %vm820, %v799, 0
        %v861 = vsel %vm820, %v800, 0
        %v864 = vsel %vm820, %v801, 0
        %v867 = vsel %vm820, %v802, 0
        %v870 = vsel %vm820, %v803, 0
        %v873 = vsel %vm820, %v804, 0
        %v876 = vsel %vm820, %v805, 0
        %v879 = vsel %vm820, %v806, 0
        %v882 = vsel %vm820, %v807, 0
        %v885 = vsel %vm820, %v808, 0
        %v888 = vsel %vm820, %v809, 0
        %v891 = vsel %vm820, %v810, 0
        %v894 = vsel %vm820, %v811, 0
        %v897 = vsel %vm820, %v812, 0
        %v900 = vsel %vm820, %v813, 0
        %v903 = vsel %vm820, %v814, 0
        %v906 = vsel %vm820, %v815, 0
        %v909 = vsel %vm820, %v816, 0
        %v912 = vsel %vm820, %v817, 0
        %v915 = vsel %vm820, %v818, 0
        %v918 = vsel %vm820, %v819, 0
        %920 = vmatprep.subr.bf16.mxu0 0
        %921 = vmatpush1.bf16.xpose.msra.mxu0 %v825
        %922 = vmatprep.subr.bf16.mxu0 0
        %923 = vmatpush1.bf16.xpose.msra.mxu0 %v828
        %924 = vmatprep.subr.bf16.mxu0 0
        %925 = vmatpush1.bf16.xpose.msra.mxu0 %v831
        %926 = vmatprep.subr.bf16.mxu0 0
        %927 = vmatpush1.bf16.xpose.msra.mxu0 %v834
        %928 = vmatprep.subr.bf16.mxu0 0
        %929 = vmatpush1.bf16.xpose.msra.mxu0 %v837
        %930 = vmatprep.subr.bf16.mxu0 0
        %931 = vmatpush1.bf16.xpose.msra.mxu0 %v840
        %932 = vmatprep.subr.bf16.mxu0 0
        %933 = vmatpush1.bf16.xpose.msra.mxu0 %v843
        %934 = vmatprep.subr.bf16.mxu0 0
        %935 = vmatpush1.bf16.xpose.msra.mxu0 %v846
        %936 = vmatprep.subr.bf16.mxu0 0
        %937 = vmatpush1.bf16.xpose.msra.mxu0 %v849
        %938 = vmatprep.subr.bf16.mxu0 0
        %939 = vmatpush1.bf16.xpose.msra.mxu0 %v852
        %940 = vmatprep.subr.bf16.mxu0 0
        %941 = vmatpush1.bf16.xpose.msra.mxu0 %v855
        %942 = vmatprep.subr.bf16.mxu0 0
        %943 = vmatpush1.bf16.xpose.msra.mxu0 %v858
        %944 = vmatprep.subr.bf16.mxu0 0
        %945 = vmatpush1.bf16.xpose.msra.mxu0 %v861
        %946 = vmatprep.subr.bf16.mxu0 0
        %947 = vmatpush1.bf16.xpose.msra.mxu0 %v864
        %948 = vmatprep.subr.bf16.mxu0 0
        %949 = vmatpush1.bf16.xpose.msra.mxu0 %v867
        %950 = vmatprep.subr.bf16.mxu0 0
        %951 = vmatpush1.bf16.xpose.msra.mxu0 %v870
        %952 = vmatprep.mubr.bf16.mxu0 0
        %953 = vmatmul.mubr.bf16.gmra.mrb[0].mxu0 %v822
        %v954 = vpop.f32.mrb[0].mxu0
        %v955 = vadd.f32 %v643, %v954
        %v956 = vpop.f32.mrb[0].mxu0
        %v957 = vadd.f32 %v647, %v956
        %v958 = vpop.f32.mrb[0].mxu0
        %v959 = vpop.f32.mrb[0].mxu0
        %960 = vdwg.mxu0
        %961 = vmatprep.subr.bf16.mxu0 0
        %962 = vmatpush1.bf16.xpose.msra.mxu0 %v873
        %963 = vmatprep.subr.bf16.mxu0 0
        %964 = vmatpush1.bf16.xpose.msra.mxu0 %v876
        %965 = vmatprep.subr.bf16.mxu0 0
        %966 = vmatpush1.bf16.xpose.msra.mxu0 %v879
        %967 = vmatprep.subr.bf16.mxu0 0
        %968 = vmatpush1.bf16.xpose.msra.mxu0 %v882
        %969 = vmatprep.subr.bf16.mxu0 0
        %970 = vmatpush1.bf16.xpose.msra.mxu0 %v885
        %971 = vmatprep.subr.bf16.mxu0 0
        %972 = vmatpush1.bf16.xpose.msra.mxu0 %v888
        %973 = vmatprep.subr.bf16.mxu0 0
        %974 = vmatpush1.bf16.xpose.msra.mxu0 %v891
        %975 = vmatprep.subr.bf16.mxu0 0
        %976 = vmatpush1.bf16.xpose.msra.mxu0 %v894
        %977 = vmatprep.subr.bf16.mxu0 0
        %978 = vmatpush1.bf16.xpose.msra.mxu0 %v897
        %979 = vmatprep.subr.bf16.mxu0 0
        %980 = vmatpush1.bf16.xpose.msra.mxu0 %v900
        %981 = vmatprep.subr.bf16.mxu0 0
        %982 = vmatpush1.bf16.xpose.msra.mxu0 %v903
        %983 = vmatprep.subr.bf16.mxu0 0
        %984 = vmatpush1.bf16.xpose.msra.mxu0 %v906
        %985 = vmatprep.subr.bf16.mxu0 0
        %986 = vmatpush1.bf16.xpose.msra.mxu0 %v909
        %987 = vmatprep.subr.bf16.mxu0 0
        %988 = vmatpush1.bf16.xpose.msra.mxu0 %v912
        %989 = vmatprep.subr.bf16.mxu0 0
        %990 = vmatpush1.bf16.xpose.msra.mxu0 %v915
        %991 = vmatprep.subr.bf16.mxu0 0
        %992 = vmatpush1.bf16.xpose.msra.mxu0 %v918
        %993 = vmatprep.mubr.bf16.mxu0 0
        %994 = vmatmul.mubr.bf16.gmra.mrb[0].mxu0 %v822
        %v995 = vpop.f32.mrb[0].mxu0
        %v996 = vadd.f32 %v651, %v995
        %v997 = vpop.f32.mrb[0].mxu0
        %v998 = vadd.f32 %v655, %v997
        %v999 = vpop.f32.mrb[0].mxu0
        %v1000 = vpop.f32.mrb[0].mxu0
        %1001 = vdwg.mxu0
        %v1002 = vld [vmem:[#allocation4] sm:$0xff]
        %v1003 = vmax.f32 %v955, %v957
        %v1004 = vmax.f32 %v996, %v998
        %v1005 = vmax.f32 %v1003, %v1004
        %1006 = vmax.xlane.f32.xlu0 %v1005
        %v1007 = vpop.xlane.xlu0 %1006
        %v1008 = vmax.f32 %v1002, %v1007
        %v1009 = vld [vmem:[#allocation5] sm:$0xff]
        %v1010 = vsub.f32 %v1002, %v1008
        %v1011 = vmul.f32 %v1010, 1.442695
        %v1012 = vpow.pop %v1011
        %v1013 = vmul.f32 %v1009, %v1012
        %1015 = vset.pattern.permute.xlu0 0
        %1016 = vperm.xlu0 %1015, %v1008
        %v1017 = vpop.permute.xlu0 %1016
        %v1019 = vsub.f32 %v955, %v1017
        %v1020 = vsub.f32 %v957, %v1017
        %v1021 = vsub.f32 %v996, %v1017
        %v1022 = vsub.f32 %v998, %v1017
        %v1023 = vmul.f32 %v1019, 1.442695
        %v1024 = vpow.pop %v1023
        %v1025 = vmul.f32 %v1020, 1.442695
        %v1026 = vpow.pop %v1025
        %v1027 = vmul.f32 %v1021, 1.442695
        %v1028 = vpow.pop %v1027
        %v1029 = vmul.f32 %v1022, 1.442695
        %v1030 = vpow.pop %v1029
        %v1031 = vadd.f32 %v1024, %v1026
        %v1032 = vadd.f32 %v1031, %v1028
        %v1033 = vadd.f32 %v1032, %v1030
        %1034 = vadd.xlane.f32.xlu0 %v1033
        %v1035 = vpop.xlane.xlu0 %1034
        %v1036 = vadd.f32 %v1013, %v1035
        %vm1037 = vcmask 7168
        %1038 = vst.msk [vmem:[#allocation5] sm:$0xff] %vm1037, %v1036
        %1039 = vst.msk [vmem:[#allocation4] sm:$0xff] %vm1037, %v1008
        %s1040 = smul.addr %s635, 8
        %s1041 = scalar_lea.vmem [#allocation9], %s1040
        %1042 = vst [vmem:[%s1041] sm:$0xff] %v955
        %1043 = vst [vmem:[%s1041 + $0x8] sm:$0xff] %v957
        %1044 = vst [vmem:[%s1041 + $0x10] sm:$0xff] %v996
        %1045 = vst [vmem:[%s1041 + $0x18] sm:$0xff] %v998
        %p1046 = scmp.eq.s32.totalorder %s27, 1
        // Predicated region
        $region273: #{skipgram_forward.1} parent=27 // pred_check
          %p1047 = pneg %p1046
        $region274: #{skipgram_forward.1} parent=27 // pred_check_branch
          %1049 = sbr.rel (%p1047) target = $region276
        $region275: #{skipgram_forward.1} parent=27 // pred_region
          %v1050 = vld [vmem:[#allocation4] sm:$0xff]
          %v1051 = vld [vmem:[#allocation5] sm:$0xff]
          %v1052 = vlog2.pop %v1051
          %v1053 = vmul.f32 %v1052, 0.6931472
          %v1054 = vadd.f32 %v1050, %v1053
          %v1055 = vld [vmem:[#allocation9] sm:$0xff]
          %v1056 = vld [vmem:[#allocation9 + $0x8] sm:$0xff]
          %v1057 = vld [vmem:[#allocation9 + $0x10] sm:$0xff]
          %v1058 = vld [vmem:[#allocation9 + $0x18] sm:$0xff]
          %v1059 = vld [vmem:[#allocation9 + $0x20] sm:$0xff]
          %v1060 = vld [vmem:[#allocation9 + $0x28] sm:$0xff]
          %v1061 = vld [vmem:[#allocation9 + $0x30] sm:$0xff]
          %v1062 = vld [vmem:[#allocation9 + $0x38] sm:$0xff]
          %1064 = vset.pattern.permute.xlu0 0
          %1065 = vperm.xlu0 %1064, %v1054
          %v1066 = vpop.permute.xlu0 %1065
          %v1068 = vsub.f32 %v1055, %v1066
          %v1069 = vsub.f32 %v1056, %v1066
          %v1070 = vsub.f32 %v1057, %v1066
          %v1071 = vsub.f32 %v1058, %v1066
          %v1072 = vsub.f32 %v1059, %v1066
          %v1073 = vsub.f32 %v1060, %v1066
          %v1074 = vsub.f32 %v1061, %v1066
          %v1075 = vsub.f32 %v1062, %v1066
          %1076 = vst [vmem:[#allocation9] sm:$0xff] %v1068
          %1077 = vst [vmem:[#allocation9 + $0x8] sm:$0xff] %v1069
          %1078 = vst [vmem:[#allocation9 + $0x10] sm:$0xff] %v1070
          %1079 = vst [vmem:[#allocation9 + $0x18] sm:$0xff] %v1071
          %1080 = vst [vmem:[#allocation9 + $0x20] sm:$0xff] %v1072
          %1081 = vst [vmem:[#allocation9 + $0x28] sm:$0xff] %v1073
          %1082 = vst [vmem:[#allocation9 + $0x30] sm:$0xff] %v1074
          %1083 = vst [vmem:[#allocation9 + $0x38] sm:$0xff] %v1075
        $region276: #{skipgram_forward.1} parent=27 // pred_fallthru
          _
        // Predicated region
        $region277: #{skipgram_forward.1} parent=27 // pred_check
          %p1084 = pneg %p99
        $region278: #{skipgram_forward.1} parent=27 // pred_check_branch
          %1086 = sbr.rel (%p1084) target = $region280
        $region279: #{skipgram_forward.1} parent=27 // pred_region
          %s1088 = ssub.s32 1024, 1024
          %1089 = vsyncadd [#allocation10], %s1088
          %s1090 = smul.addr %s26, 8
          %s1091 = smul.addr %s1090, 128
          %s1092 = scalar_lea.hbm %s4, %s1091
          %s1094 = sshll.u32 [#allocation9], 4
          %s1095 = int_to_ptr.vmem [resolvable:$true] %s1094
          %1097 = dma.vmem_to_hbm [thread:$0]  %s1095, 1024, %s1092, [#allocation10]
        $region280: #{skipgram_forward.1} parent=27 // pred_fallthru
          _
        // Predicated region
        $region281: #{skipgram_forward.1} parent=27 // pred_check
          %p1098 = pneg %p99
        $region282: #{skipgram_forward.1} parent=27 // pred_check_branch
          %1100 = sbr.rel (%p1098) target = $region284
        $region283: #{skipgram_forward.1} parent=27 // pred_region
          %1101 = dma.done [#allocation10], 1024
        $region284: #{skipgram_forward.1} parent=27 // pred_fallthru
          _
      $region28: #{skipgram_forward.1} parent=5 // pred_fallthru
        _
      %p1102 = scmp.le.s32.totalorder 2, %s17
      // Predicated region
      $region285: #{skipgram_forward.1} parent=5 // pred_check
        %p1103 = pneg %p1102
      $region286: #{skipgram_forward.1} parent=5 // pred_check_branch
        %1105 = sbr.rel (%p1103) target = $region288
      $region287: #{skipgram_forward.1} parent=5 // pred_region
        %s1106 = ssub.s32 %s17, 2
      $region288: #{skipgram_forward.1} parent=5 // pred_fallthru
        _
    $region6: #{skipgram_forward.1} parent=1 // loop_footer
      %s21 = sadd.s32 1, %s17
    $region7: #{skipgram_forward.1} parent=1 // loop_footer_branch
      %16 = sbr.rel target = $region3
    $region8: #{skipgram_forward.1} parent=1 // loop_exit
      _
    %1107 = vsyncpa [#allocation10], 1
    %s1108 = scalar_lea.sflag [#allocation10], 1
    %1109 = vsyncpa %s1108, 1
  %1110 = vsyncmov [#allocation6]
  %s1111 = vpop.sfrf %1110
  %p1112 = scmp.eq.s32.totalorder %s1111, 0
  %p1113 = pneg %p1112
  %1115 = shalt.err (%p1113)

</llo_original>
